<compile_context>
chip_gen: v6e
topology: v6e:2x2x1
jax: 0.10.0
libtpu: 0.0.40
codegen_flags: <defaults>
</compile_context>

<pallas_src>
import jax
import jax.numpy as jnp
from jax.experimental import pallas as pl
from jax.experimental.pallas import tpu as pltpu


def _round_up(n, m):
    return ((n + m - 1) // m) * m


# -----------------------------------------------------------------------------
# Fused kernel:
#   grid = (fine_row_tiles,)
#   step 0      : y = A_pp @ xw + b           -> resident VMEM scratch (bf16)
#   every step  : out_tile = A_up[tile, :] @ y  (f32 accumulation on the MXU)
# -----------------------------------------------------------------------------
def _fused_conv_unpool_kernel(a_pp_ref, xw_ref, b_ref, a_up_ref, o_ref, y_ref):
    @pl.when(pl.program_id(0) == 0)
    def _():
        y = jnp.dot(a_pp_ref[...], xw_ref[...],
                    preferred_element_type=jnp.float32) + b_ref[...]
        y_ref[...] = y.astype(y_ref.dtype)

    o_ref[...] = jnp.dot(a_up_ref[...], y_ref[...],
                         preferred_element_type=jnp.float32).astype(o_ref.dtype)


# -----------------------------------------------------------------------------
# Wrapper: precompute xw = x @ W (f32), pad node counts / lanes, cast streamed
# operands to bf16, launch the single fused pallas_call.
# -----------------------------------------------------------------------------
def conv_block8_pallas(a_pp, x, w, b, a_up,
                       *, tile_fine=512, lane_pad=128, coarse_pad=128):
    nc, cin = x.shape
    nf = a_up.shape[0]
    dout = w.shape[1]

    dpad = _round_up(dout, lane_pad)      # lane-dense feature width
    ncp = _round_up(nc, coarse_pad)       # padded coarse dim
    nfp = _round_up(nf, tile_fine)        # padded fine dim

    bf = jnp.bfloat16

    # linear reorder (exact up to fp assoc.): (A @ x) @ W == A @ (x @ W)
    xw = x.astype(jnp.float32) @ w.astype(jnp.float32)

    # zero padding is an exact no-op for the weighted-sum aggregation math;
    # padded coarse rows of y become exactly b, but A_up's padded columns are
    # zero so they never contribute to the output.
    a_pp_p = jnp.zeros((ncp, ncp), bf).at[:nc, :nc].set(a_pp.astype(bf))
    xw_p = jnp.zeros((ncp, dpad), bf).at[:nc, :dout].set(xw.astype(bf))
    b_p = jnp.zeros((1, dpad), jnp.float32).at[:, :dout].set(b.astype(jnp.float32))
    a_up_p = jnp.zeros((nfp, ncp), bf).at[:nf, :nc].set(a_up.astype(bf))

    grid = (nfp // tile_fine,)

    out = pl.pallas_call(
        _fused_conv_unpool_kernel,
        out_shape=jax.ShapeDtypeStruct((nfp, dpad), bf),
        grid_spec=pltpu.PrefetchScalarGridSpec(
            num_scalar_prefetch=0,
            grid=grid,
            in_specs=[
                pl.BlockSpec((ncp, ncp), lambda i: (0, 0)),        # A_pp  (resident)
                pl.BlockSpec((ncp, dpad), lambda i: (0, 0)),       # xw    (resident)
                pl.BlockSpec((1, dpad), lambda i: (0, 0)),         # b     (resident)
                pl.BlockSpec((tile_fine, ncp), lambda i: (i, 0)),  # A_up  (streamed)
            ],
            out_specs=pl.BlockSpec((tile_fine, dpad), lambda i: (i, 0)),
            scratch_shapes=[pltpu.VMEM((ncp, dpad), bf)],          # resident y
        ),
        compiler_params=pltpu.CompilerParams(
            # "arbitrary": all grid steps must run on the core that produced y.
            dimension_semantics=("arbitrary",),
            vmem_limit_bytes=32 * 1024 * 1024,
        ),
        cost_estimate=pl.CostEstimate(
            flops=2 * ncp * ncp * dpad + 2 * nfp * ncp * dpad,
            transcendentals=0,
            bytes_accessed=(a_pp_p.size * 2 + xw_p.size * 2 + b_p.size * 4
                            + a_up_p.size * 2 + nfp * dpad * 2),
        ),
    )(a_pp_p, xw_p, b_p, a_up_p)

    return out[:nf, :dout].astype(jnp.float32)


# -----------------------------------------------------------------------------
# Glue (plain JAX): dense weighted adjacency from edge_index / edge_attr,
# and a pure f32 reference of the assumed module semantics.
# -----------------------------------------------------------------------------
def dense_adjacency(edge_index, edge_attr, num_src, num_dst):
    src, dst = edge_index[0], edge_index[1]
    a = jnp.zeros((num_dst, num_src), jnp.float32)
    return a.at[dst, src].add(edge_attr)


def conv_block8_ref(a_pp, x, w, b, a_up):
    y = (a_pp @ x) @ w + b          # CustomGraphConvPointPoint
    return a_up @ y                 # CustomUnpooling (weighted scatter)


if __name__ == "__main__":
    key = jax.random.PRNGKey(0)
    ks = jax.random.split(key, 10)

    # --- small synthetic mesh sizes (non-tile-multiples exercise padding) -----
    n_coarse, n_fine = 200, 400
    in_channels, out_channels = 4, 16
    n_edges_pp, n_edges_up = 1600, 1200

    # coarse point features (input x of _ConvBlock8.forward)
    x = jax.random.normal(ks[0], (n_coarse, in_channels), jnp.float32)

    # graphData['pointPoint'] : edges coarse-point -> coarse-point
    ei_pp = jnp.stack([
        jax.random.randint(ks[1], (n_edges_pp,), 0, n_coarse),
        jax.random.randint(ks[2], (n_edges_pp,), 0, n_coarse),
    ])
    ea_pp = jax.random.uniform(ks[3], (n_edges_pp,), jnp.float32)

    # graphPoolData : edges coarse-point -> fine-point (poolDataForward taken
    # to be this coarse->fine direction; definition not shipped)
    ei_up = jnp.stack([
        jax.random.randint(ks[4], (n_edges_up,), 0, n_coarse),
        jax.random.randint(ks[5], (n_edges_up,), 0, n_fine),
    ])
    ea_up = jax.random.uniform(ks[6], (n_edges_up,), jnp.float32)

    # CustomGraphConvPointPoint parameters
    w1 = jax.random.normal(ks[7], (in_channels, out_channels), jnp.float32) * 0.1
    b1 = jax.random.normal(ks[8], (1, out_channels), jnp.float32) * 0.1

    # dense weighted adjacency matrices (scatter-add glue, outside the kernel)
    a_pp = dense_adjacency(ei_pp, ea_pp, n_coarse, n_coarse)   # (Nc, Nc)
    a_up = dense_adjacency(ei_up, ea_up, n_coarse, n_fine)     # (Nf, Nc)

    out = conv_block8_pallas(a_pp, x, w1, b1, a_up)
    out = jax.block_until_ready(out)

    ref = conv_block8_ref(a_pp, x, w1, b1, a_up)
    assert out.shape == (n_fine, out_channels)
    # bf16 streamed operands / bf16 output + f32 accumulation -> loose tolerance
    assert jnp.allclose(out, ref, atol=5e-2, rtol=5e-2)

    print("KERNEL_OK")
</pallas_src>

<mosaic_0001>
module attributes {stable_mosaic.version = 11 : i64} {
  func.func @_fused_conv_unpool_kernel(%arg0: i32, %arg1: memref<256x256xbf16, #tpu.memory_space<vmem>>, %arg2: memref<256x128xbf16, #tpu.memory_space<vmem>>, %arg3: memref<1x128xf32, #tpu.memory_space<vmem>>, %arg4: memref<512x256xbf16, #tpu.memory_space<vmem>>, %arg5: memref<512x128xbf16, #tpu.memory_space<vmem>>, %arg6: memref<256x128xbf16, #tpu.memory_space<vmem>>) attributes {dimension_semantics = [#tpu.dimension_semantics<arbitrary>], iteration_bounds = array<i64: 1>, scalar_prefetch = 0 : i64, scratch_operands = 1 : i64, tpu.core_type = #tpu.core_type<tc>, window_params = [{pipeline_mode = #tpu.pipeline_mode<synchronous>, transform_indices = @transform_0, window_bounds = array<i64: 256, 256>}, {pipeline_mode = #tpu.pipeline_mode<synchronous>, transform_indices = @transform_1, window_bounds = array<i64: 256, 128>}, {pipeline_mode = #tpu.pipeline_mode<synchronous>, transform_indices = @transform_2, window_bounds = array<i64: 1, 128>}, {transform_indices = @transform_3, window_bounds = array<i64: 512, 256>}, {transform_indices = @transform_4, window_bounds = array<i64: 512, 128>}]} {
    %c0_i32 = arith.constant 0 : i32
    %0 = arith.cmpi eq, %arg0, %c0_i32 : i32
    %1 = arith.extui %0 : i1 to i32
    %c0_i32_0 = arith.constant 0 : i32
    %2 = arith.cmpi ne, %1, %c0_i32_0 : i32
    scf.if %2 {
      %c0_6 = arith.constant 0 : index
      %c0_7 = arith.constant 0 : index
      %8 = vector.load %arg1[%c0_6, %c0_7] : memref<256x256xbf16, #tpu.memory_space<vmem>>, vector<256x256xbf16>
      %c0_8 = arith.constant 0 : index
      %c0_9 = arith.constant 0 : index
      %9 = vector.load %arg2[%c0_8, %c0_9] : memref<256x128xbf16, #tpu.memory_space<vmem>>, vector<256x128xbf16>
      %cst_10 = arith.constant dense<0.000000e+00> : vector<256x128xf32>
      %10 = tpu.matmul %8, %9, %cst_10 {dimension_numbers = #tpu.dot_dimension_numbers<[1], [0], [0], [1], [0, 0, 1, 1], [], []>} : vector<256x256xbf16>, vector<256x128xbf16>, vector<256x128xf32> -> vector<256x128xf32>
      %c0_11 = arith.constant 0 : index
      %c0_12 = arith.constant 0 : index
      %11 = vector.load %arg3[%c0_11, %c0_12] : memref<1x128xf32, #tpu.memory_space<vmem>>, vector<1x128xf32>
      %12 = vector.broadcast %11 : vector<1x128xf32> to vector<256x128xf32>
      %13 = arith.addf %10, %12 : vector<256x128xf32>
      %14 = arith.truncf %13 : vector<256x128xf32> to vector<256x128xbf16>
      %c0_13 = arith.constant 0 : index
      %c0_14 = arith.constant 0 : index
      %15 = vector.load %arg6[%c0_13, %c0_14] : memref<256x128xbf16, #tpu.memory_space<vmem>>, vector<256x128xbf16>
      tpu.vector_store %arg6[%c0_13, %c0_14], %14 {strides = array<i32>} : memref<256x128xbf16, #tpu.memory_space<vmem>>, vector<256x128xbf16>,
    } else {
    }
    %c0 = arith.constant 0 : index
    %c0_1 = arith.constant 0 : index
    %3 = vector.load %arg4[%c0, %c0_1] : memref<512x256xbf16, #tpu.memory_space<vmem>>, vector<512x256xbf16>
    %c0_2 = arith.constant 0 : index
    %c0_3 = arith.constant 0 : index
    %4 = vector.load %arg6[%c0_2, %c0_3] : memref<256x128xbf16, #tpu.memory_space<vmem>>, vector<256x128xbf16>
    %cst = arith.constant dense<0.000000e+00> : vector<512x128xf32>
    %5 = tpu.matmul %3, %4, %cst {dimension_numbers = #tpu.dot_dimension_numbers<[1], [0], [0], [1], [0, 0, 1, 1], [], []>} : vector<512x256xbf16>, vector<256x128xbf16>, vector<512x128xf32> -> vector<512x128xf32>
    %6 = arith.truncf %5 : vector<512x128xf32> to vector<512x128xbf16>
    %c0_4 = arith.constant 0 : index
    %c0_5 = arith.constant 0 : index
    %7 = vector.load %arg5[%c0_4, %c0_5] : memref<512x128xbf16, #tpu.memory_space<vmem>>, vector<512x128xbf16>
    tpu.vector_store %arg5[%c0_4, %c0_5], %6 {strides = array<i32>} : memref<512x128xbf16, #tpu.memory_space<vmem>>, vector<512x128xbf16>,
    return
  }
  func.func @transform_0(%arg0: i32) -> (i32, i32) {
    %c0_i32 = arith.constant 0 : i32
    %c0_i32_0 = arith.constant 0 : i32
    %c0_i32_1 = arith.constant 0 : i32
    return %c0_i32, %c0_i32_0 : i32, i32
  }
  func.func @transform_1(%arg0: i32) -> (i32, i32) {
    %c0_i32 = arith.constant 0 : i32
    %c0_i32_0 = arith.constant 0 : i32
    %c0_i32_1 = arith.constant 0 : i32
    return %c0_i32, %c0_i32_0 : i32, i32
  }
  func.func @transform_2(%arg0: i32) -> (i32, i32) {
    %c0_i32 = arith.constant 0 : i32
    %c0_i32_0 = arith.constant 0 : i32
    %c0_i32_1 = arith.constant 0 : i32
    return %c0_i32, %c0_i32_0 : i32, i32
  }
  func.func @transform_3(%arg0: i32) -> (i32, i32) {
    %c0_i32 = arith.constant 0 : i32
    %c0_i32_0 = arith.constant 0 : i32
    return %arg0, %c0_i32 : i32, i32
  }
  func.func @transform_4(%arg0: i32) -> (i32, i32) {
    %c0_i32 = arith.constant 0 : i32
    %c0_i32_0 = arith.constant 0 : i32
    return %arg0, %c0_i32 : i32, i32
  }
}

</mosaic_0001>

<llo_original>
// kernel: tpu_custom_call.1
$region0: #{tpu_custom_call.1}
  #allocation0 [shape = 'u32[]', space=smem, size = 0x4, offset = 0x4, fixed_abs, tag = 'smem constant byte address 0x4 - core index']
  #allocation1 [shape = 'u32[144,128]{1,0:T(1,128)}', space=vmem, size = 0x12000, scoped, tag = 'internal scratch']
  #allocation2 [shape = 'bf16[256,128]{1,0:T(8,128)(2,1)}', space=vmem, size = 0x10000, scoped, tag = 'scratch operand']
  %s0 = inlined_call_operand.hbm [shape: bf16[256,256], index: 0, kind: input, shape index: {}]
  %s1 = inlined_call_operand.hbm [shape: bf16[256,128], index: 1, kind: input, shape index: {}]
  %s2 = inlined_call_operand.vmem [shape: f32[1,128], index: 2, kind: input, shape index: {}]
  %s3 = inlined_call_operand.hbm [shape: bf16[512,256], index: 3, kind: input, shape index: {}]
  %s4 = inlined_call_operand.hbm [shape: bf16[512,128], index: 4, kind: output, shape index: {}]
  %s5 = sld [smem:[#allocation0]]
  $region42: #{tpu_custom_call.1} parent=0
    _
  %s7 = ssub.s32 1, %s5
  %s8 = scalar_select 0, %s7, %s5
  $region1: #{tpu_custom_call.1} parent=0
    #allocation3 [shape = 'u8[131072]{0}', space=vmem, size = 0x20000, scoped, tag = 'input window, operand 0, single buffered']
    #allocation4 [shape = 's32[1]{0}', space=sflag, size = 0x4, scoped, tag = 'scoped memory for tpu_custom_call.1']
    #allocation5 [shape = 's32[1]{0}', space=sflag, size = 0x4, scoped, tag = 'scoped memory for tpu_custom_call.1']
    #allocation6 [shape = 'u8[65536]{0}', space=vmem, size = 0x10000, scoped, tag = 'input window, operand 1, single buffered']
    #allocation7 [shape = 's32[1]{0}', space=sflag, size = 0x4, scoped, tag = 'scoped memory for tpu_custom_call.1']
    #allocation8 [shape = 'u8[262144]{0}', space=vmem, size = 0x40000, scoped, tag = 'input window, operand 3, single buffered']
    #allocation9 [shape = 'u8[131072]{0}', space=vmem, size = 0x20000, scoped, tag = 'output window, operand 0, single buffered']
    %9 = vsyncpa [#allocation4], 0
    %10 = vsyncpa [#allocation7], 0
    %11 = vsyncpa [#allocation5], 0
    // Predicated region
    $region2: #{tpu_custom_call.1} parent=1 // pred_check
      _
    $region3: #{tpu_custom_call.1} parent=1 // pred_check_branch
      %13 = sbr.rel (0) target = $region5
    $region4: #{tpu_custom_call.1} parent=1 // pred_region
      %s15 = ssub.s32 4096, 4096
      %16 = vsyncadd [#allocation4], %s15
      %s17 = sshll.u32 [#allocation3], 4
      %s18 = int_to_ptr.vmem [resolvable:$true] %s17
      %23 = dma.hbm_to_vmem [thread:$0]  %s0, 4096, %s18, [#allocation4], 128, 128, 8
    $region5: #{tpu_custom_call.1} parent=1 // pred_fallthru
      _
    // Predicated region
    $region6: #{tpu_custom_call.1} parent=1 // pred_check
      _
    $region7: #{tpu_custom_call.1} parent=1 // pred_check_branch
      %25 = sbr.rel (0) target = $region9
    $region8: #{tpu_custom_call.1} parent=1 // pred_region
      %s27 = ssub.s32 2048, 2048
      %28 = vsyncadd [#allocation7], %s27
      %s29 = sshll.u32 [#allocation6], 4
      %s30 = int_to_ptr.vmem [resolvable:$true] %s29
      %35 = dma.hbm_to_vmem [thread:$0]  %s1, 2048, %s30, [#allocation7], 64, 64, 4
    $region9: #{tpu_custom_call.1} parent=1 // pred_fallthru
      _
    // Predicated region
    $region10: #{tpu_custom_call.1} parent=1 // pred_check
      _
    $region11: #{tpu_custom_call.1} parent=1 // pred_check_branch
      %37 = sbr.rel (0) target = $region13
    $region12: #{tpu_custom_call.1} parent=1 // pred_region
      _
    $region13: #{tpu_custom_call.1} parent=1 // pred_fallthru
      _
    // Predicated region
    $region14: #{tpu_custom_call.1} parent=1 // pred_check
      _
    $region15: #{tpu_custom_call.1} parent=1 // pred_check_branch
      %39 = sbr.rel (0) target = $region17
    $region16: #{tpu_custom_call.1} parent=1 // pred_region
      %s41 = ssub.s32 8192, 8192
      %42 = vsyncadd [#allocation7], %s41
      %s43 = sshll.u32 [#allocation8], 4
      %s44 = int_to_ptr.vmem [resolvable:$true] %s43
      %49 = dma.hbm_to_vmem [thread:$0]  %s3, 8192, %s44, [#allocation7], 128, 128, 8
    $region17: #{tpu_custom_call.1} parent=1 // pred_fallthru
      _
    // Predicated region
    $region18: #{tpu_custom_call.1} parent=1 // pred_check
      _
    $region19: #{tpu_custom_call.1} parent=1 // pred_check_branch
      %51 = sbr.rel (0) target = $region21
    $region20: #{tpu_custom_call.1} parent=1 // pred_region
      %52 = dma.done [#allocation4], 4096
    $region21: #{tpu_custom_call.1} parent=1 // pred_fallthru
      _
    // Predicated region
    $region22: #{tpu_custom_call.1} parent=1 // pred_check
      _
    $region23: #{tpu_custom_call.1} parent=1 // pred_check_branch
      %54 = sbr.rel (0) target = $region25
    $region24: #{tpu_custom_call.1} parent=1 // pred_region
      %55 = dma.done [#allocation7], 2048
    $region25: #{tpu_custom_call.1} parent=1 // pred_fallthru
      _
    // Predicated region
    $region26: #{tpu_custom_call.1} parent=1 // pred_check
      _
    $region27: #{tpu_custom_call.1} parent=1 // pred_check_branch
      %57 = sbr.rel (0) target = $region29
    $region28: #{tpu_custom_call.1} parent=1 // pred_region
      %58 = dma.done [#allocation7], 8192
    $region29: #{tpu_custom_call.1} parent=1 // pred_fallthru
      _
    %p60 = scmp.eq.s32.totalorder 0, 0
    // Predicated region
    $region30: #{tpu_custom_call.1} parent=1 // pred_check
      %p61 = pneg %p60
    $region31: #{tpu_custom_call.1} parent=1 // pred_check_branch
      %63 = sbr.rel (%p61) target = $region33
    $region32: #{tpu_custom_call.1} parent=1 // pred_region
      %v64 = vld [vmem:[#allocation3] sm:$0xff]
      %v65 = vld [vmem:[#allocation3 + $0x8] sm:$0xff]
      %v66 = vld [vmem:[#allocation3 + $0x10] sm:$0xff]
      %v67 = vld [vmem:[#allocation3 + $0x18] sm:$0xff]
      %v68 = vld [vmem:[#allocation3 + $0x20] sm:$0xff]
      %v69 = vld [vmem:[#allocation3 + $0x28] sm:$0xff]
      %v70 = vld [vmem:[#allocation3 + $0x30] sm:$0xff]
      %v71 = vld [vmem:[#allocation3 + $0x38] sm:$0xff]
      %v72 = vld [vmem:[#allocation3 + $0x40] sm:$0xff]
      %v73 = vld [vmem:[#allocation3 + $0x48] sm:$0xff]
      %v74 = vld [vmem:[#allocation3 + $0x50] sm:$0xff]
      %v75 = vld [vmem:[#allocation3 + $0x58] sm:$0xff]
      %v76 = vld [vmem:[#allocation3 + $0x60] sm:$0xff]
      %v77 = vld [vmem:[#allocation3 + $0x68] sm:$0xff]
      %v78 = vld [vmem:[#allocation3 + $0x70] sm:$0xff]
      %v79 = vld [vmem:[#allocation3 + $0x78] sm:$0xff]
      %v80 = vld [vmem:[#allocation3 + $0x80] sm:$0xff]
      %v81 = vld [vmem:[#allocation3 + $0x88] sm:$0xff]
      %v82 = vld [vmem:[#allocation3 + $0x90] sm:$0xff]
      %v83 = vld [vmem:[#allocation3 + $0x98] sm:$0xff]
      %v84 = vld [vmem:[#allocation3 + $0xa0] sm:$0xff]
      %v85 = vld [vmem:[#allocation3 + $0xa8] sm:$0xff]
      %v86 = vld [vmem:[#allocation3 + $0xb0] sm:$0xff]
      %v87 = vld [vmem:[#allocation3 + $0xb8] sm:$0xff]
      %v88 = vld [vmem:[#allocation3 + $0xc0] sm:$0xff]
      %v89 = vld [vmem:[#allocation3 + $0xc8] sm:$0xff]
      %v90 = vld [vmem:[#allocation3 + $0xd0] sm:$0xff]
      %v91 = vld [vmem:[#allocation3 + $0xd8] sm:$0xff]
      %v92 = vld [vmem:[#allocation3 + $0xe0] sm:$0xff]
      %v93 = vld [vmem:[#allocation3 + $0xe8] sm:$0xff]
      %v94 = vld [vmem:[#allocation3 + $0xf0] sm:$0xff]
      %v95 = vld [vmem:[#allocation3 + $0xf8] sm:$0xff]
      %v96 = vld [vmem:[#allocation6] sm:$0xf]
      %v97 = vld [vmem:[#allocation6 + $0x4] sm:$0xf]
      %v98 = vld [vmem:[#allocation6 + $0x8] sm:$0xf]
      %v99 = vld [vmem:[#allocation6 + $0xc] sm:$0xf]
      %v100 = vld [vmem:[#allocation6 + $0x10] sm:$0xf]
      %v101 = vld [vmem:[#allocation6 + $0x14] sm:$0xf]
      %v102 = vld [vmem:[#allocation6 + $0x18] sm:$0xf]
      %v103 = vld [vmem:[#allocation6 + $0x1c] sm:$0xf]
      %v104 = vld [vmem:[#allocation6 + $0x20] sm:$0xf]
      %v105 = vld [vmem:[#allocation6 + $0x24] sm:$0xf]
      %v106 = vld [vmem:[#allocation6 + $0x28] sm:$0xf]
      %v107 = vld [vmem:[#allocation6 + $0x2c] sm:$0xf]
      %v108 = vld [vmem:[#allocation6 + $0x30] sm:$0xf]
      %v109 = vld [vmem:[#allocation6 + $0x34] sm:$0xf]
      %v110 = vld [vmem:[#allocation6 + $0x38] sm:$0xf]
      %v111 = vld [vmem:[#allocation6 + $0x3c] sm:$0xf]
      %v112 = vld [vmem:[#allocation6 + $0x40] sm:$0xf]
      %v113 = vld [vmem:[#allocation6 + $0x44] sm:$0xf]
      %v114 = vld [vmem:[#allocation6 + $0x48] sm:$0xf]
      %v115 = vld [vmem:[#allocation6 + $0x4c] sm:$0xf]
      %v116 = vld [vmem:[#allocation6 + $0x50] sm:$0xf]
      %v117 = vld [vmem:[#allocation6 + $0x54] sm:$0xf]
      %v118 = vld [vmem:[#allocation6 + $0x58] sm:$0xf]
      %v119 = vld [vmem:[#allocation6 + $0x5c] sm:$0xf]
      %v120 = vld [vmem:[#allocation6 + $0x60] sm:$0xf]
      %v121 = vld [vmem:[#allocation6 + $0x64] sm:$0xf]
      %v122 = vld [vmem:[#allocation6 + $0x68] sm:$0xf]
      %v123 = vld [vmem:[#allocation6 + $0x6c] sm:$0xf]
      %v124 = vld [vmem:[#allocation6 + $0x70] sm:$0xf]
      %v125 = vld [vmem:[#allocation6 + $0x74] sm:$0xf]
      %v126 = vld [vmem:[#allocation6 + $0x78] sm:$0xf]
      %v127 = vld [vmem:[#allocation6 + $0x7c] sm:$0xf]
      %v128 = vld [vmem:[%s2] sm:$0x1]
      %v130 = vlaneseq
      %v131 = vshrl.u32 %v130, 7
      %v132 = vsub.s32 0, %v131
      %v133 = vrot.slane %v128, %v132
      %v167 = vunpack.c.l.b16 %v64
      %v168 = vunpack.c.h.b16 %v64
      %v169 = vunpack.c.l.b16 %v65
      %v170 = vunpack.c.h.b16 %v65
      %v171 = vunpack.c.l.b16 %v66
      %v172 = vunpack.c.h.b16 %v66
      %v173 = vunpack.c.l.b16 %v67
      %v174 = vunpack.c.h.b16 %v67
      %v175 = vunpack.c.l.b16 %v68
      %v176 = vunpack.c.h.b16 %v68
      %v177 = vunpack.c.l.b16 %v69
      %v178 = vunpack.c.h.b16 %v69
      %v179 = vunpack.c.l.b16 %v70
      %v180 = vunpack.c.h.b16 %v70
      %v181 = vunpack.c.l.b16 %v71
      %v182 = vunpack.c.h.b16 %v71
      %v183 = vunpack.c.l.b16 %v72
      %v184 = vunpack.c.h.b16 %v72
      %v185 = vunpack.c.l.b16 %v73
      %v186 = vunpack.c.h.b16 %v73
      %v187 = vunpack.c.l.b16 %v74
      %v188 = vunpack.c.h.b16 %v74
      %v189 = vunpack.c.l.b16 %v75
      %v190 = vunpack.c.h.b16 %v75
      %v191 = vunpack.c.l.b16 %v76
      %v192 = vunpack.c.h.b16 %v76
      %v193 = vunpack.c.l.b16 %v77
      %v194 = vunpack.c.h.b16 %v77
      %v195 = vunpack.c.l.b16 %v78
      %v196 = vunpack.c.h.b16 %v78
      %v197 = vunpack.c.l.b16 %v79
      %v198 = vunpack.c.h.b16 %v79
      %v199 = vunpack.c.l.b16 %v80
      %v200 = vunpack.c.h.b16 %v80
      %v201 = vunpack.c.l.b16 %v81
      %v202 = vunpack.c.h.b16 %v81
      %v203 = vunpack.c.l.b16 %v82
      %v204 = vunpack.c.h.b16 %v82
      %v205 = vunpack.c.l.b16 %v83
      %v206 = vunpack.c.h.b16 %v83
      %v207 = vunpack.c.l.b16 %v84
      %v208 = vunpack.c.h.b16 %v84
      %v209 = vunpack.c.l.b16 %v85
      %v210 = vunpack.c.h.b16 %v85
      %v211 = vunpack.c.l.b16 %v86
      %v212 = vunpack.c.h.b16 %v86
      %v213 = vunpack.c.l.b16 %v87
      %v214 = vunpack.c.h.b16 %v87
      %v215 = vunpack.c.l.b16 %v88
      %v216 = vunpack.c.h.b16 %v88
      %v217 = vunpack.c.l.b16 %v89
      %v218 = vunpack.c.h.b16 %v89
      %v219 = vunpack.c.l.b16 %v90
      %v220 = vunpack.c.h.b16 %v90
      %v221 = vunpack.c.l.b16 %v91
      %v222 = vunpack.c.h.b16 %v91
      %v223 = vunpack.c.l.b16 %v92
      %v224 = vunpack.c.h.b16 %v92
      %v225 = vunpack.c.l.b16 %v93
      %v226 = vunpack.c.h.b16 %v93
      %v227 = vunpack.c.l.b16 %v94
      %v228 = vunpack.c.h.b16 %v94
      %v229 = vunpack.c.l.b16 %v95
      %v230 = vunpack.c.h.b16 %v95
      %v231 = vpack.c.b16 %v169, %v167
      %v232 = vpack.c.b16 %v170, %v168
      %v233 = vpack.c.b16 %v173, %v171
      %v234 = vpack.c.b16 %v174, %v172
      %v235 = vpack.c.b16 %v177, %v175
      %v236 = vpack.c.b16 %v178, %v176
      %v237 = vpack.c.b16 %v181, %v179
      %v238 = vpack.c.b16 %v182, %v180
      %v239 = vpack.c.b16 %v185, %v183
      %v240 = vpack.c.b16 %v186, %v184
      %v241 = vpack.c.b16 %v189, %v187
      %v242 = vpack.c.b16 %v190, %v188
      %v243 = vpack.c.b16 %v193, %v191
      %v244 = vpack.c.b16 %v194, %v192
      %v245 = vpack.c.b16 %v197, %v195
      %v246 = vpack.c.b16 %v198, %v196
      %v247 = vpack.c.b16 %v201, %v199
      %v248 = vpack.c.b16 %v202, %v200
      %v249 = vpack.c.b16 %v205, %v203
      %v250 = vpack.c.b16 %v206, %v204
      %v251 = vpack.c.b16 %v209, %v207
      %v252 = vpack.c.b16 %v210, %v208
      %v253 = vpack.c.b16 %v213, %v211
      %v254 = vpack.c.b16 %v214, %v212
      %v255 = vpack.c.b16 %v217, %v215
      %v256 = vpack.c.b16 %v218, %v216
      %v257 = vpack.c.b16 %v221, %v219
      %v258 = vpack.c.b16 %v222, %v220
      %v259 = vpack.c.b16 %v225, %v223
      %v260 = vpack.c.b16 %v226, %v224
      %v261 = vpack.c.b16 %v229, %v227
      %v262 = vpack.c.b16 %v230, %v228
      %v327 = vunpack.c.l.b16 %v96
      %v328 = vunpack.c.l.b16 %v97
      %v329 = vunpack.c.l.b16 %v98
      %v330 = vunpack.c.l.b16 %v99
      %v331 = vunpack.c.l.b16 %v100
      %v332 = vunpack.c.l.b16 %v101
      %v333 = vunpack.c.l.b16 %v102
      %v334 = vunpack.c.l.b16 %v103
      %v335 = vunpack.c.l.b16 %v104
      %v336 = vunpack.c.l.b16 %v105
      %v337 = vunpack.c.l.b16 %v106
      %v338 = vunpack.c.l.b16 %v107
      %v339 = vunpack.c.l.b16 %v108
      %v340 = vunpack.c.l.b16 %v109
      %v341 = vunpack.c.l.b16 %v110
      %v342 = vunpack.c.l.b16 %v111
      %v343 = vunpack.c.l.b16 %v112
      %v344 = vunpack.c.l.b16 %v113
      %v345 = vunpack.c.l.b16 %v114
      %v346 = vunpack.c.l.b16 %v115
      %v347 = vunpack.c.l.b16 %v116
      %v348 = vunpack.c.l.b16 %v117
      %v349 = vunpack.c.l.b16 %v118
      %v350 = vunpack.c.l.b16 %v119
      %v351 = vunpack.c.l.b16 %v120
      %v352 = vunpack.c.l.b16 %v121
      %v353 = vunpack.c.l.b16 %v122
      %v354 = vunpack.c.l.b16 %v123
      %v355 = vunpack.c.l.b16 %v124
      %v356 = vunpack.c.l.b16 %v125
      %v357 = vunpack.c.l.b16 %v126
      %v358 = vunpack.c.l.b16 %v127
      %v359 = vpack.c.b16 %v328, %v327
      %v360 = vpack.c.b16 %v330, %v329
      %v361 = vpack.c.b16 %v332, %v331
      %v362 = vpack.c.b16 %v334, %v333
      %v363 = vpack.c.b16 %v336, %v335
      %v364 = vpack.c.b16 %v338, %v337
      %v365 = vpack.c.b16 %v340, %v339
      %v366 = vpack.c.b16 %v342, %v341
      %v367 = vpack.c.b16 %v344, %v343
      %v368 = vpack.c.b16 %v346, %v345
      %v369 = vpack.c.b16 %v348, %v347
      %v370 = vpack.c.b16 %v350, %v349
      %v371 = vpack.c.b16 %v352, %v351
      %v372 = vpack.c.b16 %v354, %v353
      %v373 = vpack.c.b16 %v356, %v355
      %v374 = vpack.c.b16 %v358, %v357
      %391 = vmatprep.subr.bf16.mxu0 0
      %392 = vmatpush1.bf16.msra.mxu0 %v366
      %393 = vmatprep.subr.bf16.mxu0 0
      %394 = vmatpush1.bf16.msra.mxu0 %v365
      %395 = vmatprep.subr.bf16.mxu0 0
      %396 = vmatpush1.bf16.msra.mxu0 %v364
      %397 = vmatprep.subr.bf16.mxu0 0
      %398 = vmatpush1.bf16.msra.mxu0 %v363
      %399 = vmatprep.subr.bf16.mxu0 0
      %400 = vmatpush1.bf16.msra.mxu0 %v362
      %401 = vmatprep.subr.bf16.mxu0 0
      %402 = vmatpush1.bf16.msra.mxu0 %v361
      %403 = vmatprep.subr.bf16.mxu0 0
      %404 = vmatpush1.bf16.msra.mxu0 %v360
      %405 = vmatprep.subr.bf16.mxu0 0
      %406 = vmatpush1.bf16.msra.mxu0 %v359
      %407 = vmatprep.subr.bf16.mxu0 0
      %408 = vmatpush2.bf16.msra.mxu0 %v374
      %409 = vmatprep.subr.bf16.mxu0 0
      %410 = vmatpush2.bf16.msra.mxu0 %v373
      %411 = vmatprep.subr.bf16.mxu0 0
      %412 = vmatpush2.bf16.msra.mxu0 %v372
      %413 = vmatprep.subr.bf16.mxu0 0
      %414 = vmatpush2.bf16.msra.mxu0 %v371
      %415 = vmatprep.subr.bf16.mxu0 0
      %416 = vmatpush2.bf16.msra.mxu0 %v370
      %417 = vmatprep.subr.bf16.mxu0 0
      %418 = vmatpush2.bf16.msra.mxu0 %v369
      %419 = vmatprep.subr.bf16.mxu0 0
      %420 = vmatpush2.bf16.msra.mxu0 %v368
      %421 = vmatprep.subr.bf16.mxu0 0
      %422 = vmatpush2.bf16.msra.mxu0 %v367
      %423 = vmatprep.mubr.bf16.mxu0 %v232
      %424 = vmatmul.mubr.bf16.gmra.mxu0 %v231
      %v425 = vpop.f32.mrf.mxu0
      %v426 = vadd.f32 %v133, %v425
      %v427 = vpop.f32.mrf.mxu0
      %v428 = vpop.f32.mrf.mxu0
      %v429 = vadd.f32 %v133, %v428
      %v430 = vpop.f32.mrf.mxu0
      %431 = vmatprep.mubr.bf16.mxu0 %v234
      %432 = vmatmul.mubr.bf16.gmra.mxu0 %v233
      %v433 = vpop.f32.mrf.mxu0
      %v434 = vadd.f32 %v133, %v433
      %v435 = vpop.f32.mrf.mxu0
      %v436 = vpop.f32.mrf.mxu0
      %v437 = vadd.f32 %v133, %v436
      %v438 = vpop.f32.mrf.mxu0
      %439 = vmatprep.mubr.bf16.mxu0 %v236
      %440 = vmatmul.mubr.bf16.gmra.mxu0 %v235
      %v441 = vpop.f32.mrf.mxu0
      %v442 = vadd.f32 %v133, %v441
      %v443 = vpop.f32.mrf.mxu0
      %v444 = vpop.f32.mrf.mxu0
      %v445 = vadd.f32 %v133, %v444
      %v446 = vpop.f32.mrf.mxu0
      %447 = vmatprep.mubr.bf16.mxu0 %v238
      %448 = vmatmul.mubr.bf16.gmra.mxu0 %v237
      %v449 = vpop.f32.mrf.mxu0
      %v450 = vadd.f32 %v133, %v449
      %v451 = vpop.f32.mrf.mxu0
      %v452 = vpop.f32.mrf.mxu0
      %v453 = vadd.f32 %v133, %v452
      %v454 = vpop.f32.mrf.mxu0
      %455 = vmatprep.mubr.bf16.mxu0 %v240
      %456 = vmatmul.mubr.bf16.gmra.mxu0 %v239
      %v457 = vpop.f32.mrf.mxu0
      %v458 = vadd.f32 %v133, %v457
      %v459 = vpop.f32.mrf.mxu0
      %v460 = vpop.f32.mrf.mxu0
      %v461 = vadd.f32 %v133, %v460
      %v462 = vpop.f32.mrf.mxu0
      %463 = vmatprep.mubr.bf16.mxu0 %v242
      %464 = vmatmul.mubr.bf16.gmra.mxu0 %v241
      %v465 = vpop.f32.mrf.mxu0
      %v466 = vadd.f32 %v133, %v465
      %v467 = vpop.f32.mrf.mxu0
      %v468 = vpop.f32.mrf.mxu0
      %v469 = vadd.f32 %v133, %v468
      %v470 = vpop.f32.mrf.mxu0
      %471 = vmatprep.mubr.bf16.mxu0 %v244
      %472 = vmatmul.mubr.bf16.gmra.mxu0 %v243
      %v473 = vpop.f32.mrf.mxu0
      %v474 = vadd.f32 %v133, %v473
      %v475 = vpop.f32.mrf.mxu0
      %v476 = vpop.f32.mrf.mxu0
      %v477 = vadd.f32 %v133, %v476
      %v478 = vpop.f32.mrf.mxu0
      %479 = vmatprep.mubr.bf16.mxu0 %v246
      %480 = vmatmul.mubr.bf16.gmra.mxu0 %v245
      %v481 = vpop.f32.mrf.mxu0
      %v482 = vadd.f32 %v133, %v481
      %v483 = vpop.f32.mrf.mxu0
      %v484 = vpop.f32.mrf.mxu0
      %v485 = vadd.f32 %v133, %v484
      %v486 = vpop.f32.mrf.mxu0
      %487 = vmatprep.mubr.bf16.mxu0 %v248
      %488 = vmatmul.mubr.bf16.gmra.mxu0 %v247
      %v489 = vpop.f32.mrf.mxu0
      %v490 = vadd.f32 %v133, %v489
      %v491 = vpop.f32.mrf.mxu0
      %v492 = vpop.f32.mrf.mxu0
      %v493 = vadd.f32 %v133, %v492
      %v494 = vpop.f32.mrf.mxu0
      %495 = vmatprep.mubr.bf16.mxu0 %v250
      %496 = vmatmul.mubr.bf16.gmra.mxu0 %v249
      %v497 = vpop.f32.mrf.mxu0
      %v498 = vadd.f32 %v133, %v497
      %v499 = vpop.f32.mrf.mxu0
      %v500 = vpop.f32.mrf.mxu0
      %v501 = vadd.f32 %v133, %v500
      %v502 = vpop.f32.mrf.mxu0
      %503 = vmatprep.mubr.bf16.mxu0 %v252
      %504 = vmatmul.mubr.bf16.gmra.mxu0 %v251
      %v505 = vpop.f32.mrf.mxu0
      %v506 = vadd.f32 %v133, %v505
      %v507 = vpop.f32.mrf.mxu0
      %v508 = vpop.f32.mrf.mxu0
      %v509 = vadd.f32 %v133, %v508
      %v510 = vpop.f32.mrf.mxu0
      %511 = vmatprep.mubr.bf16.mxu0 %v254
      %512 = vmatmul.mubr.bf16.gmra.mxu0 %v253
      %v513 = vpop.f32.mrf.mxu0
      %v514 = vadd.f32 %v133, %v513
      %v515 = vpop.f32.mrf.mxu0
      %v516 = vpop.f32.mrf.mxu0
      %v517 = vadd.f32 %v133, %v516
      %v518 = vpop.f32.mrf.mxu0
      %519 = vmatprep.mubr.bf16.mxu0 %v256
      %520 = vmatmul.mubr.bf16.gmra.mxu0 %v255
      %v521 = vpop.f32.mrf.mxu0
      %v522 = vadd.f32 %v133, %v521
      %v523 = vpop.f32.mrf.mxu0
      %v524 = vpop.f32.mrf.mxu0
      %v525 = vadd.f32 %v133, %v524
      %v526 = vpop.f32.mrf.mxu0
      %527 = vmatprep.mubr.bf16.mxu0 %v258
      %528 = vmatmul.mubr.bf16.gmra.mxu0 %v257
      %v529 = vpop.f32.mrf.mxu0
      %v530 = vadd.f32 %v133, %v529
      %v531 = vpop.f32.mrf.mxu0
      %v532 = vpop.f32.mrf.mxu0
      %v533 = vadd.f32 %v133, %v532
      %v534 = vpop.f32.mrf.mxu0
      %535 = vmatprep.mubr.bf16.mxu0 %v260
      %536 = vmatmul.mubr.bf16.gmra.mxu0 %v259
      %v537 = vpop.f32.mrf.mxu0
      %v538 = vadd.f32 %v133, %v537
      %v539 = vpop.f32.mrf.mxu0
      %v540 = vpop.f32.mrf.mxu0
      %v541 = vadd.f32 %v133, %v540
      %v542 = vpop.f32.mrf.mxu0
      %543 = vmatprep.mubr.bf16.mxu0 %v262
      %544 = vmatmul.mubr.bf16.gmra.mxu0 %v261
      %v545 = vpop.f32.mrf.mxu0
      %v546 = vadd.f32 %v133, %v545
      %v547 = vpop.f32.mrf.mxu0
      %v548 = vpop.f32.mrf.mxu0
      %v549 = vadd.f32 %v133, %v548
      %v550 = vpop.f32.mrf.mxu0
      %551 = vdwg.mxu0
      %v552 = vpack.c.bf16 %v429, %v426
      %v553 = vpack.c.bf16 %v437, %v434
      %v554 = vpack.c.bf16 %v445, %v442
      %v555 = vpack.c.bf16 %v453, %v450
      %v556 = vpack.c.bf16 %v461, %v458
      %v557 = vpack.c.bf16 %v469, %v466
      %v558 = vpack.c.bf16 %v477, %v474
      %v559 = vpack.c.bf16 %v485, %v482
      %v560 = vpack.c.bf16 %v493, %v490
      %v561 = vpack.c.bf16 %v501, %v498
      %v562 = vpack.c.bf16 %v509, %v506
      %v563 = vpack.c.bf16 %v517, %v514
      %v564 = vpack.c.bf16 %v525, %v522
      %v565 = vpack.c.bf16 %v533, %v530
      %v566 = vpack.c.bf16 %v541, %v538
      %v567 = vpack.c.bf16 %v549, %v546
      %v584 = vunpack.c.l.b16 %v552
      %v585 = vunpack.c.h.b16 %v552
      %v586 = vunpack.c.l.b16 %v553
      %v587 = vunpack.c.h.b16 %v553
      %v588 = vunpack.c.l.b16 %v554
      %v589 = vunpack.c.h.b16 %v554
      %v590 = vunpack.c.l.b16 %v555
      %v591 = vunpack.c.h.b16 %v555
      %v592 = vunpack.c.l.b16 %v556
      %v593 = vunpack.c.h.b16 %v556
      %v594 = vunpack.c.l.b16 %v557
      %v595 = vunpack.c.h.b16 %v557
      %v596 = vunpack.c.l.b16 %v558
      %v597 = vunpack.c.h.b16 %v558
      %v598 = vunpack.c.l.b16 %v559
      %v599 = vunpack.c.h.b16 %v559
      %v600 = vunpack.c.l.b16 %v560
      %v601 = vunpack.c.h.b16 %v560
      %v602 = vunpack.c.l.b16 %v561
      %v603 = vunpack.c.h.b16 %v561
      %v604 = vunpack.c.l.b16 %v562
      %v605 = vunpack.c.h.b16 %v562
      %v606 = vunpack.c.l.b16 %v563
      %v607 = vunpack.c.h.b16 %v563
      %v608 = vunpack.c.l.b16 %v564
      %v609 = vunpack.c.h.b16 %v564
      %v610 = vunpack.c.l.b16 %v565
      %v611 = vunpack.c.h.b16 %v565
      %v612 = vunpack.c.l.b16 %v566
      %v613 = vunpack.c.h.b16 %v566
      %v614 = vunpack.c.l.b16 %v567
      %v615 = vunpack.c.h.b16 %v567
      %v616 = vpack.c.b16 %v584, %v584
      %v617 = vpack.c.b16 %v585, %v585
      %v618 = vpack.c.b16 %v586, %v586
      %v619 = vpack.c.b16 %v587, %v587
      %v620 = vpack.c.b16 %v588, %v588
      %v621 = vpack.c.b16 %v589, %v589
      %v622 = vpack.c.b16 %v590, %v590
      %v623 = vpack.c.b16 %v591, %v591
      %v624 = vpack.c.b16 %v592, %v592
      %v625 = vpack.c.b16 %v593, %v593
      %v626 = vpack.c.b16 %v594, %v594
      %v627 = vpack.c.b16 %v595, %v595
      %v628 = vpack.c.b16 %v596, %v596
      %v629 = vpack.c.b16 %v597, %v597
      %v630 = vpack.c.b16 %v598, %v598
      %v631 = vpack.c.b16 %v599, %v599
      %v632 = vpack.c.b16 %v600, %v600
      %v633 = vpack.c.b16 %v601, %v601
      %v634 = vpack.c.b16 %v602, %v602
      %v635 = vpack.c.b16 %v603, %v603
      %v636 = vpack.c.b16 %v604, %v604
      %v637 = vpack.c.b16 %v605, %v605
      %v638 = vpack.c.b16 %v606, %v606
      %v639 = vpack.c.b16 %v607, %v607
      %v640 = vpack.c.b16 %v608, %v608
      %v641 = vpack.c.b16 %v609, %v609
      %v642 = vpack.c.b16 %v610, %v610
      %v643 = vpack.c.b16 %v611, %v611
      %v644 = vpack.c.b16 %v612, %v612
      %v645 = vpack.c.b16 %v613, %v613
      %v646 = vpack.c.b16 %v614, %v614
      %v647 = vpack.c.b16 %v615, %v615
      %680 = vst [vmem:[#allocation2] sm:$0xf] %v616
      %681 = vst [vmem:[#allocation2 + $0x4] sm:$0xf] %v617
      %682 = vst [vmem:[#allocation2 + $0x8] sm:$0xf] %v618
      %683 = vst [vmem:[#allocation2 + $0xc] sm:$0xf] %v619
      %684 = vst [vmem:[#allocation2 + $0x10] sm:$0xf] %v620
      %685 = vst [vmem:[#allocation2 + $0x14] sm:$0xf] %v621
      %686 = vst [vmem:[#allocation2 + $0x18] sm:$0xf] %v622
      %687 = vst [vmem:[#allocation2 + $0x1c] sm:$0xf] %v623
      %688 = vst [vmem:[#allocation2 + $0x20] sm:$0xf] %v624
      %689 = vst [vmem:[#allocation2 + $0x24] sm:$0xf] %v625
      %690 = vst [vmem:[#allocation2 + $0x28] sm:$0xf] %v626
      %691 = vst [vmem:[#allocation2 + $0x2c] sm:$0xf] %v627
      %692 = vst [vmem:[#allocation2 + $0x30] sm:$0xf] %v628
      %693 = vst [vmem:[#allocation2 + $0x34] sm:$0xf] %v629
      %694 = vst [vmem:[#allocation2 + $0x38] sm:$0xf] %v630
      %695 = vst [vmem:[#allocation2 + $0x3c] sm:$0xf] %v631
      %696 = vst [vmem:[#allocation2 + $0x40] sm:$0xf] %v632
      %697 = vst [vmem:[#allocation2 + $0x44] sm:$0xf] %v633
      %698 = vst [vmem:[#allocation2 + $0x48] sm:$0xf] %v634
      %699 = vst [vmem:[#allocation2 + $0x4c] sm:$0xf] %v635
      %700 = vst [vmem:[#allocation2 + $0x50] sm:$0xf] %v636
      %701 = vst [vmem:[#allocation2 + $0x54] sm:$0xf] %v637
      %702 = vst [vmem:[#allocation2 + $0x58] sm:$0xf] %v638
      %703 = vst [vmem:[#allocation2 + $0x5c] sm:$0xf] %v639
      %704 = vst [vmem:[#allocation2 + $0x60] sm:$0xf] %v640
      %705 = vst [vmem:[#allocation2 + $0x64] sm:$0xf] %v641
      %706 = vst [vmem:[#allocation2 + $0x68] sm:$0xf] %v642
      %707 = vst [vmem:[#allocation2 + $0x6c] sm:$0xf] %v643
      %708 = vst [vmem:[#allocation2 + $0x70] sm:$0xf] %v644
      %709 = vst [vmem:[#allocation2 + $0x74] sm:$0xf] %v645
      %710 = vst [vmem:[#allocation2 + $0x78] sm:$0xf] %v646
      %711 = vst [vmem:[#allocation2 + $0x7c] sm:$0xf] %v647
    $region33: #{tpu_custom_call.1} parent=1 // pred_fallthru
      _
    %v712 = vld [vmem:[#allocation8] sm:$0xff]
    %v713 = vld [vmem:[#allocation8 + $0x8] sm:$0xff]
    %v714 = vld [vmem:[#allocation8 + $0x10] sm:$0xff]
    %v715 = vld [vmem:[#allocation8 + $0x18] sm:$0xff]
    %v716 = vld [vmem:[#allocation8 + $0x20] sm:$0xff]
    %v717 = vld [vmem:[#allocation8 + $0x28] sm:$0xff]
    %v718 = vld [vmem:[#allocation8 + $0x30] sm:$0xff]
    %v719 = vld [vmem:[#allocation8 + $0x38] sm:$0xff]
    %v720 = vld [vmem:[#allocation8 + $0x40] sm:$0xff]
    %v721 = vld [vmem:[#allocation8 + $0x48] sm:$0xff]
    %v722 = vld [vmem:[#allocation8 + $0x50] sm:$0xff]
    %v723 = vld [vmem:[#allocation8 + $0x58] sm:$0xff]
    %v724 = vld [vmem:[#allocation8 + $0x60] sm:$0xff]
    %v725 = vld [vmem:[#allocation8 + $0x68] sm:$0xff]
    %v726 = vld [vmem:[#allocation8 + $0x70] sm:$0xff]
    %v727 = vld [vmem:[#allocation8 + $0x78] sm:$0xff]
    %v728 = vld [vmem:[#allocation8 + $0x80] sm:$0xff]
    %v729 = vld [vmem:[#allocation8 + $0x88] sm:$0xff]
    %v730 = vld [vmem:[#allocation8 + $0x90] sm:$0xff]
    %v731 = vld [vmem:[#allocation8 + $0x98] sm:$0xff]
    %v732 = vld [vmem:[#allocation8 + $0xa0] sm:$0xff]
    %v733 = vld [vmem:[#allocation8 + $0xa8] sm:$0xff]
    %v734 = vld [vmem:[#allocation8 + $0xb0] sm:$0xff]
    %v735 = vld [vmem:[#allocation8 + $0xb8] sm:$0xff]
    %v736 = vld [vmem:[#allocation8 + $0xc0] sm:$0xff]
    %v737 = vld [vmem:[#allocation8 + $0xc8] sm:$0xff]
    %v738 = vld [vmem:[#allocation8 + $0xd0] sm:$0xff]
    %v739 = vld [vmem:[#allocation8 + $0xd8] sm:$0xff]
    %v740 = vld [vmem:[#allocation8 + $0xe0] sm:$0xff]
    %v741 = vld [vmem:[#allocation8 + $0xe8] sm:$0xff]
    %v742 = vld [vmem:[#allocation8 + $0xf0] sm:$0xff]
    %v743 = vld [vmem:[#allocation8 + $0xf8] sm:$0xff]
    %v744 = vld [vmem:[#allocation8 + $0x100] sm:$0xff]
    %v745 = vld [vmem:[#allocation8 + $0x108] sm:$0xff]
    %v746 = vld [vmem:[#allocation8 + $0x110] sm:$0xff]
    %v747 = vld [vmem:[#allocation8 + $0x118] sm:$0xff]
    %v748 = vld [vmem:[#allocation8 + $0x120] sm:$0xff]
    %v749 = vld [vmem:[#allocation8 + $0x128] sm:$0xff]
    %v750 = vld [vmem:[#allocation8 + $0x130] sm:$0xff]
    %v751 = vld [vmem:[#allocation8 + $0x138] sm:$0xff]
    %v752 = vld [vmem:[#allocation8 + $0x140] sm:$0xff]
    %v753 = vld [vmem:[#allocation8 + $0x148] sm:$0xff]
    %v754 = vld [vmem:[#allocation8 + $0x150] sm:$0xff]
    %v755 = vld [vmem:[#allocation8 + $0x158] sm:$0xff]
    %v756 = vld [vmem:[#allocation8 + $0x160] sm:$0xff]
    %v757 = vld [vmem:[#allocation8 + $0x168] sm:$0xff]
    %v758 = vld [vmem:[#allocation8 + $0x170] sm:$0xff]
    %v759 = vld [vmem:[#allocation8 + $0x178] sm:$0xff]
    %v760 = vld [vmem:[#allocation8 + $0x180] sm:$0xff]
    %v761 = vld [vmem:[#allocation8 + $0x188] sm:$0xff]
    %v762 = vld [vmem:[#allocation8 + $0x190] sm:$0xff]
    %v763 = vld [vmem:[#allocation8 + $0x198] sm:$0xff]
    %v764 = vld [vmem:[#allocation8 + $0x1a0] sm:$0xff]
    %v765 = vld [vmem:[#allocation8 + $0x1a8] sm:$0xff]
    %v766 = vld [vmem:[#allocation8 + $0x1b0] sm:$0xff]
    %v767 = vld [vmem:[#allocation8 + $0x1b8] sm:$0xff]
    %v768 = vld [vmem:[#allocation8 + $0x1c0] sm:$0xff]
    %v769 = vld [vmem:[#allocation8 + $0x1c8] sm:$0xff]
    %v770 = vld [vmem:[#allocation8 + $0x1d0] sm:$0xff]
    %v771 = vld [vmem:[#allocation8 + $0x1d8] sm:$0xff]
    %v772 = vld [vmem:[#allocation8 + $0x1e0] sm:$0xff]
    %v773 = vld [vmem:[#allocation8 + $0x1e8] sm:$0xff]
    %v774 = vld [vmem:[#allocation8 + $0x1f0] sm:$0xff]
    %v775 = vld [vmem:[#allocation8 + $0x1f8] sm:$0xff]
    %v776 = vld [vmem:[#allocation2] sm:$0xf]
    %v777 = vld [vmem:[#allocation2 + $0x4] sm:$0xf]
    %v778 = vld [vmem:[#allocation2 + $0x8] sm:$0xf]
    %v779 = vld [vmem:[#allocation2 + $0xc] sm:$0xf]
    %v780 = vld [vmem:[#allocation2 + $0x10] sm:$0xf]
    %v781 = vld [vmem:[#allocation2 + $0x14] sm:$0xf]
    %v782 = vld [vmem:[#allocation2 + $0x18] sm:$0xf]
    %v783 = vld [vmem:[#allocation2 + $0x1c] sm:$0xf]
    %v784 = vld [vmem:[#allocation2 + $0x20] sm:$0xf]
    %v785 = vld [vmem:[#allocation2 + $0x24] sm:$0xf]
    %v786 = vld [vmem:[#allocation2 + $0x28] sm:$0xf]
    %v787 = vld [vmem:[#allocation2 + $0x2c] sm:$0xf]
    %v788 = vld [vmem:[#allocation2 + $0x30] sm:$0xf]
    %v789 = vld [vmem:[#allocation2 + $0x34] sm:$0xf]
    %v790 = vld [vmem:[#allocation2 + $0x38] sm:$0xf]
    %v791 = vld [vmem:[#allocation2 + $0x3c] sm:$0xf]
    %v792 = vld [vmem:[#allocation2 + $0x40] sm:$0xf]
    %v793 = vld [vmem:[#allocation2 + $0x44] sm:$0xf]
    %v794 = vld [vmem:[#allocation2 + $0x48] sm:$0xf]
    %v795 = vld [vmem:[#allocation2 + $0x4c] sm:$0xf]
    %v796 = vld [vmem:[#allocation2 + $0x50] sm:$0xf]
    %v797 = vld [vmem:[#allocation2 + $0x54] sm:$0xf]
    %v798 = vld [vmem:[#allocation2 + $0x58] sm:$0xf]
    %v799 = vld [vmem:[#allocation2 + $0x5c] sm:$0xf]
    %v800 = vld [vmem:[#allocation2 + $0x60] sm:$0xf]
    %v801 = vld [vmem:[#allocation2 + $0x64] sm:$0xf]
    %v802 = vld [vmem:[#allocation2 + $0x68] sm:$0xf]
    %v803 = vld [vmem:[#allocation2 + $0x6c] sm:$0xf]
    %v804 = vld [vmem:[#allocation2 + $0x70] sm:$0xf]
    %v805 = vld [vmem:[#allocation2 + $0x74] sm:$0xf]
    %v806 = vld [vmem:[#allocation2 + $0x78] sm:$0xf]
    %v807 = vld [vmem:[#allocation2 + $0x7c] sm:$0xf]
    %v872 = vunpack.c.l.b16 %v712
    %v873 = vunpack.c.h.b16 %v712
    %v874 = vunpack.c.l.b16 %v713
    %v875 = vunpack.c.h.b16 %v713
    %v876 = vunpack.c.l.b16 %v714
    %v877 = vunpack.c.h.b16 %v714
    %v878 = vunpack.c.l.b16 %v715
    %v879 = vunpack.c.h.b16 %v715
    %v880 = vunpack.c.l.b16 %v716
    %v881 = vunpack.c.h.b16 %v716
    %v882 = vunpack.c.l.b16 %v717
    %v883 = vunpack.c.h.b16 %v717
    %v884 = vunpack.c.l.b16 %v718
    %v885 = vunpack.c.h.b16 %v718
    %v886 = vunpack.c.l.b16 %v719
    %v887 = vunpack.c.h.b16 %v719
    %v888 = vunpack.c.l.b16 %v720
    %v889 = vunpack.c.h.b16 %v720
    %v890 = vunpack.c.l.b16 %v721
    %v891 = vunpack.c.h.b16 %v721
    %v892 = vunpack.c.l.b16 %v722
    %v893 = vunpack.c.h.b16 %v722
    %v894 = vunpack.c.l.b16 %v723
    %v895 = vunpack.c.h.b16 %v723
    %v896 = vunpack.c.l.b16 %v724
    %v897 = vunpack.c.h.b16 %v724
    %v898 = vunpack.c.l.b16 %v725
    %v899 = vunpack.c.h.b16 %v725
    %v900 = vunpack.c.l.b16 %v726
    %v901 = vunpack.c.h.b16 %v726
    %v902 = vunpack.c.l.b16 %v727
    %v903 = vunpack.c.h.b16 %v727
    %v904 = vunpack.c.l.b16 %v728
    %v905 = vunpack.c.h.b16 %v728
    %v906 = vunpack.c.l.b16 %v729
    %v907 = vunpack.c.h.b16 %v729
    %v908 = vunpack.c.l.b16 %v730
    %v909 = vunpack.c.h.b16 %v730
    %v910 = vunpack.c.l.b16 %v731
    %v911 = vunpack.c.h.b16 %v731
    %v912 = vunpack.c.l.b16 %v732
    %v913 = vunpack.c.h.b16 %v732
    %v914 = vunpack.c.l.b16 %v733
    %v915 = vunpack.c.h.b16 %v733
    %v916 = vunpack.c.l.b16 %v734
    %v917 = vunpack.c.h.b16 %v734
    %v918 = vunpack.c.l.b16 %v735
    %v919 = vunpack.c.h.b16 %v735
    %v920 = vunpack.c.l.b16 %v736
    %v921 = vunpack.c.h.b16 %v736
    %v922 = vunpack.c.l.b16 %v737
    %v923 = vunpack.c.h.b16 %v737
    %v924 = vunpack.c.l.b16 %v738
    %v925 = vunpack.c.h.b16 %v738
    %v926 = vunpack.c.l.b16 %v739
    %v927 = vunpack.c.h.b16 %v739
    %v928 = vunpack.c.l.b16 %v740
    %v929 = vunpack.c.h.b16 %v740
    %v930 = vunpack.c.l.b16 %v741
    %v931 = vunpack.c.h.b16 %v741
    %v932 = vunpack.c.l.b16 %v742
    %v933 = vunpack.c.h.b16 %v742
    %v934 = vunpack.c.l.b16 %v743
    %v935 = vunpack.c.h.b16 %v743
    %v936 = vunpack.c.l.b16 %v744
    %v937 = vunpack.c.h.b16 %v744
    %v938 = vunpack.c.l.b16 %v745
    %v939 = vunpack.c.h.b16 %v745
    %v940 = vunpack.c.l.b16 %v746
    %v941 = vunpack.c.h.b16 %v746
    %v942 = vunpack.c.l.b16 %v747
    %v943 = vunpack.c.h.b16 %v747
    %v944 = vunpack.c.l.b16 %v748
    %v945 = vunpack.c.h.b16 %v748
    %v946 = vunpack.c.l.b16 %v749
    %v947 = vunpack.c.h.b16 %v749
    %v948 = vunpack.c.l.b16 %v750
    %v949 = vunpack.c.h.b16 %v750
    %v950 = vunpack.c.l.b16 %v751
    %v951 = vunpack.c.h.b16 %v751
    %v952 = vunpack.c.l.b16 %v752
    %v953 = vunpack.c.h.b16 %v752
    %v954 = vunpack.c.l.b16 %v753
    %v955 = vunpack.c.h.b16 %v753
    %v956 = vunpack.c.l.b16 %v754
    %v957 = vunpack.c.h.b16 %v754
    %v958 = vunpack.c.l.b16 %v755
    %v959 = vunpack.c.h.b16 %v755
    %v960 = vunpack.c.l.b16 %v756
    %v961 = vunpack.c.h.b16 %v756
    %v962 = vunpack.c.l.b16 %v757
    %v963 = vunpack.c.h.b16 %v757
    %v964 = vunpack.c.l.b16 %v758
    %v965 = vunpack.c.h.b16 %v758
    %v966 = vunpack.c.l.b16 %v759
    %v967 = vunpack.c.h.b16 %v759
    %v968 = vunpack.c.l.b16 %v760
    %v969 = vunpack.c.h.b16 %v760
    %v970 = vunpack.c.l.b16 %v761
    %v971 = vunpack.c.h.b16 %v761
    %v972 = vunpack.c.l.b16 %v762
    %v973 = vunpack.c.h.b16 %v762
    %v974 = vunpack.c.l.b16 %v763
    %v975 = vunpack.c.h.b16 %v763
    %v976 = vunpack.c.l.b16 %v764
    %v977 = vunpack.c.h.b16 %v764
    %v978 = vunpack.c.l.b16 %v765
    %v979 = vunpack.c.h.b16 %v765
    %v980 = vunpack.c.l.b16 %v766
    %v981 = vunpack.c.h.b16 %v766
    %v982 = vunpack.c.l.b16 %v767
    %v983 = vunpack.c.h.b16 %v767
    %v984 = vunpack.c.l.b16 %v768
    %v985 = vunpack.c.h.b16 %v768
    %v986 = vunpack.c.l.b16 %v769
    %v987 = vunpack.c.h.b16 %v769
    %v988 = vunpack.c.l.b16 %v770
    %v989 = vunpack.c.h.b16 %v770
    %v990 = vunpack.c.l.b16 %v771
    %v991 = vunpack.c.h.b16 %v771
    %v992 = vunpack.c.l.b16 %v772
    %v993 = vunpack.c.h.b16 %v772
    %v994 = vunpack.c.l.b16 %v773
    %v995 = vunpack.c.h.b16 %v773
    %v996 = vunpack.c.l.b16 %v774
    %v997 = vunpack.c.h.b16 %v774
    %v998 = vunpack.c.l.b16 %v775
    %v999 = vunpack.c.h.b16 %v775
    %v1000 = vpack.c.b16 %v874, %v872
    %v1001 = vpack.c.b16 %v875, %v873
    %v1002 = vpack.c.b16 %v878, %v876
    %v1003 = vpack.c.b16 %v879, %v877
    %v1004 = vpack.c.b16 %v882, %v880
    %v1005 = vpack.c.b16 %v883, %v881
    %v1006 = vpack.c.b16 %v886, %v884
    %v1007 = vpack.c.b16 %v887, %v885
    %v1008 = vpack.c.b16 %v890, %v888
    %v1009 = vpack.c.b16 %v891, %v889
    %v1010 = vpack.c.b16 %v894, %v892
    %v1011 = vpack.c.b16 %v895, %v893
    %v1012 = vpack.c.b16 %v898, %v896
    %v1013 = vpack.c.b16 %v899, %v897
    %v1014 = vpack.c.b16 %v902, %v900
    %v1015 = vpack.c.b16 %v903, %v901
    %v1016 = vpack.c.b16 %v906, %v904
    %v1017 = vpack.c.b16 %v907, %v905
    %v1018 = vpack.c.b16 %v910, %v908
    %v1019 = vpack.c.b16 %v911, %v909
    %v1020 = vpack.c.b16 %v914, %v912
    %v1021 = vpack.c.b16 %v915, %v913
    %v1022 = vpack.c.b16 %v918, %v916
    %v1023 = vpack.c.b16 %v919, %v917
    %v1024 = vpack.c.b16 %v922, %v920
    %v1025 = vpack.c.b16 %v923, %v921
    %v1026 = vpack.c.b16 %v926, %v924
    %v1027 = vpack.c.b16 %v927, %v925
    %v1028 = vpack.c.b16 %v930, %v928
    %v1029 = vpack.c.b16 %v931, %v929
    %v1030 = vpack.c.b16 %v934, %v932
    %v1031 = vpack.c.b16 %v935, %v933
    %v1032 = vpack.c.b16 %v938, %v936
    %v1033 = vpack.c.b16 %v939, %v937
    %v1034 = vpack.c.b16 %v942, %v940
    %v1035 = vpack.c.b16 %v943, %v941
    %v1036 = vpack.c.b16 %v946, %v944
    %v1037 = vpack.c.b16 %v947, %v945
    %v1038 = vpack.c.b16 %v950, %v948
    %v1039 = vpack.c.b16 %v951, %v949
    %v1040 = vpack.c.b16 %v954, %v952
    %v1041 = vpack.c.b16 %v955, %v953
    %v1042 = vpack.c.b16 %v958, %v956
    %v1043 = vpack.c.b16 %v959, %v957
    %v1044 = vpack.c.b16 %v962, %v960
    %v1045 = vpack.c.b16 %v963, %v961
    %v1046 = vpack.c.b16 %v966, %v964
    %v1047 = vpack.c.b16 %v967, %v965
    %v1048 = vpack.c.b16 %v970, %v968
    %v1049 = vpack.c.b16 %v971, %v969
    %v1050 = vpack.c.b16 %v974, %v972
    %v1051 = vpack.c.b16 %v975, %v973
    %v1052 = vpack.c.b16 %v978, %v976
    %v1053 = vpack.c.b16 %v979, %v977
    %v1054 = vpack.c.b16 %v982, %v980
    %v1055 = vpack.c.b16 %v983, %v981
    %v1056 = vpack.c.b16 %v986, %v984
    %v1057 = vpack.c.b16 %v987, %v985
    %v1058 = vpack.c.b16 %v990, %v988
    %v1059 = vpack.c.b16 %v991, %v989
    %v1060 = vpack.c.b16 %v994, %v992
    %v1061 = vpack.c.b16 %v995, %v993
    %v1062 = vpack.c.b16 %v998, %v996
    %v1063 = vpack.c.b16 %v999, %v997
    %v1160 = vunpack.c.l.b16 %v776
    %v1161 = vunpack.c.l.b16 %v777
    %v1162 = vunpack.c.l.b16 %v778
    %v1163 = vunpack.c.l.b16 %v779
    %v1164 = vunpack.c.l.b16 %v780
    %v1165 = vunpack.c.l.b16 %v781
    %v1166 = vunpack.c.l.b16 %v782
    %v1167 = vunpack.c.l.b16 %v783
    %v1168 = vunpack.c.l.b16 %v784
    %v1169 = vunpack.c.l.b16 %v785
    %v1170 = vunpack.c.l.b16 %v786
    %v1171 = vunpack.c.l.b16 %v787
    %v1172 = vunpack.c.l.b16 %v788
    %v1173 = vunpack.c.l.b16 %v789
    %v1174 = vunpack.c.l.b16 %v790
    %v1175 = vunpack.c.l.b16 %v791
    %v1176 = vunpack.c.l.b16 %v792
    %v1177 = vunpack.c.l.b16 %v793
    %v1178 = vunpack.c.l.b16 %v794
    %v1179 = vunpack.c.l.b16 %v795
    %v1180 = vunpack.c.l.b16 %v796
    %v1181 = vunpack.c.l.b16 %v797
    %v1182 = vunpack.c.l.b16 %v798
    %v1183 = vunpack.c.l.b16 %v799
    %v1184 = vunpack.c.l.b16 %v800
    %v1185 = vunpack.c.l.b16 %v801
    %v1186 = vunpack.c.l.b16 %v802
    %v1187 = vunpack.c.l.b16 %v803
    %v1188 = vunpack.c.l.b16 %v804
    %v1189 = vunpack.c.l.b16 %v805
    %v1190 = vunpack.c.l.b16 %v806
    %v1191 = vunpack.c.l.b16 %v807
    %v1192 = vpack.c.b16 %v1161, %v1160
    %v1193 = vpack.c.b16 %v1163, %v1162
    %v1194 = vpack.c.b16 %v1165, %v1164
    %v1195 = vpack.c.b16 %v1167, %v1166
    %v1196 = vpack.c.b16 %v1169, %v1168
    %v1197 = vpack.c.b16 %v1171, %v1170
    %v1198 = vpack.c.b16 %v1173, %v1172
    %v1199 = vpack.c.b16 %v1175, %v1174
    %v1200 = vpack.c.b16 %v1177, %v1176
    %v1201 = vpack.c.b16 %v1179, %v1178
    %v1202 = vpack.c.b16 %v1181, %v1180
    %v1203 = vpack.c.b16 %v1183, %v1182
    %v1204 = vpack.c.b16 %v1185, %v1184
    %v1205 = vpack.c.b16 %v1187, %v1186
    %v1206 = vpack.c.b16 %v1189, %v1188
    %v1207 = vpack.c.b16 %v1191, %v1190
    %1224 = vmatprep.subr.bf16.mxu0 0
    %1225 = vmatpush1.bf16.msra.mxu0 %v1199
    %1226 = vmatprep.subr.bf16.mxu0 0
    %1227 = vmatpush1.bf16.msra.mxu0 %v1198
    %1228 = vmatprep.subr.bf16.mxu0 0
    %1229 = vmatpush1.bf16.msra.mxu0 %v1197
    %1230 = vmatprep.subr.bf16.mxu0 0
    %1231 = vmatpush1.bf16.msra.mxu0 %v1196
    %1232 = vmatprep.subr.bf16.mxu0 0
    %1233 = vmatpush1.bf16.msra.mxu0 %v1195
    %1234 = vmatprep.subr.bf16.mxu0 0
    %1235 = vmatpush1.bf16.msra.mxu0 %v1194
    %1236 = vmatprep.subr.bf16.mxu0 0
    %1237 = vmatpush1.bf16.msra.mxu0 %v1193
    %1238 = vmatprep.subr.bf16.mxu0 0
    %1239 = vmatpush1.bf16.msra.mxu0 %v1192
    %1240 = vmatprep.subr.bf16.mxu0 0
    %1241 = vmatpush2.bf16.msra.mxu0 %v1207
    %1242 = vmatprep.subr.bf16.mxu0 0
    %1243 = vmatpush2.bf16.msra.mxu0 %v1206
    %1244 = vmatprep.subr.bf16.mxu0 0
    %1245 = vmatpush2.bf16.msra.mxu0 %v1205
    %1246 = vmatprep.subr.bf16.mxu0 0
    %1247 = vmatpush2.bf16.msra.mxu0 %v1204
    %1248 = vmatprep.subr.bf16.mxu0 0
    %1249 = vmatpush2.bf16.msra.mxu0 %v1203
    %1250 = vmatprep.subr.bf16.mxu0 0
    %1251 = vmatpush2.bf16.msra.mxu0 %v1202
    %1252 = vmatprep.subr.bf16.mxu0 0
    %1253 = vmatpush2.bf16.msra.mxu0 %v1201
    %1254 = vmatprep.subr.bf16.mxu0 0
    %1255 = vmatpush2.bf16.msra.mxu0 %v1200
    %1256 = vmatprep.mubr.bf16.mxu0 %v1001
    %1257 = vmatmul.mubr.bf16.gmra.mxu0 %v1000
    %v1258 = vpop.f32.mrf.mxu0
    %v1259 = vadd.f32 0.0, %v1258
    %v1260 = vpop.f32.mrf.mxu0
    %v1261 = vpop.f32.mrf.mxu0
    %v1262 = vadd.f32 0.0, %v1261
    %v1263 = vpop.f32.mrf.mxu0
    %1264 = vmatprep.mubr.bf16.mxu0 %v1003
    %1265 = vmatmul.mubr.bf16.gmra.mxu0 %v1002
    %v1266 = vpop.f32.mrf.mxu0
    %v1267 = vadd.f32 0.0, %v1266
    %v1268 = vpop.f32.mrf.mxu0
    %v1269 = vpop.f32.mrf.mxu0
    %v1270 = vadd.f32 0.0, %v1269
    %v1271 = vpop.f32.mrf.mxu0
    %1272 = vmatprep.mubr.bf16.mxu0 %v1005
    %1273 = vmatmul.mubr.bf16.gmra.mxu0 %v1004
    %v1274 = vpop.f32.mrf.mxu0
    %v1275 = vadd.f32 0.0, %v1274
    %v1276 = vpop.f32.mrf.mxu0
    %v1277 = vpop.f32.mrf.mxu0
    %v1278 = vadd.f32 0.0, %v1277
    %v1279 = vpop.f32.mrf.mxu0
    %1280 = vmatprep.mubr.bf16.mxu0 %v1007
    %1281 = vmatmul.mubr.bf16.gmra.mxu0 %v1006
    %v1282 = vpop.f32.mrf.mxu0
    %v1283 = vadd.f32 0.0, %v1282
    %v1284 = vpop.f32.mrf.mxu0
    %v1285 = vpop.f32.mrf.mxu0
    %v1286 = vadd.f32 0.0, %v1285
    %v1287 = vpop.f32.mrf.mxu0
    %1288 = vmatprep.mubr.bf16.mxu0 %v1009
    %1289 = vmatmul.mubr.bf16.gmra.mxu0 %v1008
    %v1290 = vpop.f32.mrf.mxu0
    %v1291 = vadd.f32 0.0, %v1290
    %v1292 = vpop.f32.mrf.mxu0
    %v1293 = vpop.f32.mrf.mxu0
    %v1294 = vadd.f32 0.0, %v1293
    %v1295 = vpop.f32.mrf.mxu0
    %1296 = vmatprep.mubr.bf16.mxu0 %v1011
    %1297 = vmatmul.mubr.bf16.gmra.mxu0 %v1010
    %v1298 = vpop.f32.mrf.mxu0
    %v1299 = vadd.f32 0.0, %v1298
    %v1300 = vpop.f32.mrf.mxu0
    %v1301 = vpop.f32.mrf.mxu0
    %v1302 = vadd.f32 0.0, %v1301
    %v1303 = vpop.f32.mrf.mxu0
    %1304 = vmatprep.mubr.bf16.mxu0 %v1013
    %1305 = vmatmul.mubr.bf16.gmra.mxu0 %v1012
    %v1306 = vpop.f32.mrf.mxu0
    %v1307 = vadd.f32 0.0, %v1306
    %v1308 = vpop.f32.mrf.mxu0
    %v1309 = vpop.f32.mrf.mxu0
    %v1310 = vadd.f32 0.0, %v1309
    %v1311 = vpop.f32.mrf.mxu0
    %1312 = vmatprep.mubr.bf16.mxu0 %v1015
    %1313 = vmatmul.mubr.bf16.gmra.mxu0 %v1014
    %v1314 = vpop.f32.mrf.mxu0
    %v1315 = vadd.f32 0.0, %v1314
    %v1316 = vpop.f32.mrf.mxu0
    %v1317 = vpop.f32.mrf.mxu0
    %v1318 = vadd.f32 0.0, %v1317
    %v1319 = vpop.f32.mrf.mxu0
    %1320 = vmatprep.mubr.bf16.mxu0 %v1017
    %1321 = vmatmul.mubr.bf16.gmra.mxu0 %v1016
    %v1322 = vpop.f32.mrf.mxu0
    %v1323 = vadd.f32 0.0, %v1322
    %v1324 = vpop.f32.mrf.mxu0
    %v1325 = vpop.f32.mrf.mxu0
    %v1326 = vadd.f32 0.0, %v1325
    %v1327 = vpop.f32.mrf.mxu0
    %1328 = vmatprep.mubr.bf16.mxu0 %v1019
    %1329 = vmatmul.mubr.bf16.gmra.mxu0 %v1018
    %v1330 = vpop.f32.mrf.mxu0
    %v1331 = vadd.f32 0.0, %v1330
    %v1332 = vpop.f32.mrf.mxu0
    %v1333 = vpop.f32.mrf.mxu0
    %v1334 = vadd.f32 0.0, %v1333
    %v1335 = vpop.f32.mrf.mxu0
    %1336 = vmatprep.mubr.bf16.mxu0 %v1021
    %1337 = vmatmul.mubr.bf16.gmra.mxu0 %v1020
    %v1338 = vpop.f32.mrf.mxu0
    %v1339 = vadd.f32 0.0, %v1338
    %v1340 = vpop.f32.mrf.mxu0
    %v1341 = vpop.f32.mrf.mxu0
    %v1342 = vadd.f32 0.0, %v1341
    %v1343 = vpop.f32.mrf.mxu0
    %1344 = vmatprep.mubr.bf16.mxu0 %v1023
    %1345 = vmatmul.mubr.bf16.gmra.mxu0 %v1022
    %v1346 = vpop.f32.mrf.mxu0
    %v1347 = vadd.f32 0.0, %v1346
    %v1348 = vpop.f32.mrf.mxu0
    %v1349 = vpop.f32.mrf.mxu0
    %v1350 = vadd.f32 0.0, %v1349
    %v1351 = vpop.f32.mrf.mxu0
    %1352 = vmatprep.mubr.bf16.mxu0 %v1025
    %1353 = vmatmul.mubr.bf16.gmra.mxu0 %v1024
    %v1354 = vpop.f32.mrf.mxu0
    %v1355 = vadd.f32 0.0, %v1354
    %v1356 = vpop.f32.mrf.mxu0
    %v1357 = vpop.f32.mrf.mxu0
    %v1358 = vadd.f32 0.0, %v1357
    %v1359 = vpop.f32.mrf.mxu0
    %1360 = vmatprep.mubr.bf16.mxu0 %v1027
    %1361 = vmatmul.mubr.bf16.gmra.mxu0 %v1026
    %v1362 = vpop.f32.mrf.mxu0
    %v1363 = vadd.f32 0.0, %v1362
    %v1364 = vpop.f32.mrf.mxu0
    %v1365 = vpop.f32.mrf.mxu0
    %v1366 = vadd.f32 0.0, %v1365
    %v1367 = vpop.f32.mrf.mxu0
    %1368 = vmatprep.mubr.bf16.mxu0 %v1029
    %1369 = vmatmul.mubr.bf16.gmra.mxu0 %v1028
    %v1370 = vpop.f32.mrf.mxu0
    %v1371 = vadd.f32 0.0, %v1370
    %v1372 = vpop.f32.mrf.mxu0
    %v1373 = vpop.f32.mrf.mxu0
    %v1374 = vadd.f32 0.0, %v1373
    %v1375 = vpop.f32.mrf.mxu0
    %1376 = vmatprep.mubr.bf16.mxu0 %v1031
    %1377 = vmatmul.mubr.bf16.gmra.mxu0 %v1030
    %v1378 = vpop.f32.mrf.mxu0
    %v1379 = vadd.f32 0.0, %v1378
    %v1380 = vpop.f32.mrf.mxu0
    %v1381 = vpop.f32.mrf.mxu0
    %v1382 = vadd.f32 0.0, %v1381
    %v1383 = vpop.f32.mrf.mxu0
    %1384 = vmatprep.mubr.bf16.mxu0 %v1033
    %1385 = vmatmul.mubr.bf16.gmra.mxu0 %v1032
    %v1386 = vpop.f32.mrf.mxu0
    %v1387 = vadd.f32 0.0, %v1386
    %v1388 = vpop.f32.mrf.mxu0
    %v1389 = vpop.f32.mrf.mxu0
    %v1390 = vadd.f32 0.0, %v1389
    %v1391 = vpop.f32.mrf.mxu0
    %1392 = vmatprep.mubr.bf16.mxu0 %v1035
    %1393 = vmatmul.mubr.bf16.gmra.mxu0 %v1034
    %v1394 = vpop.f32.mrf.mxu0
    %v1395 = vadd.f32 0.0, %v1394
    %v1396 = vpop.f32.mrf.mxu0
    %v1397 = vpop.f32.mrf.mxu0
    %v1398 = vadd.f32 0.0, %v1397
    %v1399 = vpop.f32.mrf.mxu0
    %1400 = vmatprep.mubr.bf16.mxu0 %v1037
    %1401 = vmatmul.mubr.bf16.gmra.mxu0 %v1036
    %v1402 = vpop.f32.mrf.mxu0
    %v1403 = vadd.f32 0.0, %v1402
    %v1404 = vpop.f32.mrf.mxu0
    %v1405 = vpop.f32.mrf.mxu0
    %v1406 = vadd.f32 0.0, %v1405
    %v1407 = vpop.f32.mrf.mxu0
    %1408 = vmatprep.mubr.bf16.mxu0 %v1039
    %1409 = vmatmul.mubr.bf16.gmra.mxu0 %v1038
    %v1410 = vpop.f32.mrf.mxu0
    %v1411 = vadd.f32 0.0, %v1410
    %v1412 = vpop.f32.mrf.mxu0
    %v1413 = vpop.f32.mrf.mxu0
    %v1414 = vadd.f32 0.0, %v1413
    %v1415 = vpop.f32.mrf.mxu0
    %1416 = vmatprep.mubr.bf16.mxu0 %v1041
    %1417 = vmatmul.mubr.bf16.gmra.mxu0 %v1040
    %v1418 = vpop.f32.mrf.mxu0
    %v1419 = vadd.f32 0.0, %v1418
    %v1420 = vpop.f32.mrf.mxu0
    %v1421 = vpop.f32.mrf.mxu0
    %v1422 = vadd.f32 0.0, %v1421
    %v1423 = vpop.f32.mrf.mxu0
    %1424 = vmatprep.mubr.bf16.mxu0 %v1043
    %1425 = vmatmul.mubr.bf16.gmra.mxu0 %v1042
    %v1426 = vpop.f32.mrf.mxu0
    %v1427 = vadd.f32 0.0, %v1426
    %v1428 = vpop.f32.mrf.mxu0
    %v1429 = vpop.f32.mrf.mxu0
    %v1430 = vadd.f32 0.0, %v1429
    %v1431 = vpop.f32.mrf.mxu0
    %1432 = vmatprep.mubr.bf16.mxu0 %v1045
    %1433 = vmatmul.mubr.bf16.gmra.mxu0 %v1044
    %v1434 = vpop.f32.mrf.mxu0
    %v1435 = vadd.f32 0.0, %v1434
    %v1436 = vpop.f32.mrf.mxu0
    %v1437 = vpop.f32.mrf.mxu0
    %v1438 = vadd.f32 0.0, %v1437
    %v1439 = vpop.f32.mrf.mxu0
    %1440 = vmatprep.mubr.bf16.mxu0 %v1047
    %1441 = vmatmul.mubr.bf16.gmra.mxu0 %v1046
    %v1442 = vpop.f32.mrf.mxu0
    %v1443 = vadd.f32 0.0, %v1442
    %v1444 = vpop.f32.mrf.mxu0
    %v1445 = vpop.f32.mrf.mxu0
    %v1446 = vadd.f32 0.0, %v1445
    %v1447 = vpop.f32.mrf.mxu0
    %1448 = vmatprep.mubr.bf16.mxu0 %v1049
    %1449 = vmatmul.mubr.bf16.gmra.mxu0 %v1048
    %v1450 = vpop.f32.mrf.mxu0
    %v1451 = vadd.f32 0.0, %v1450
    %v1452 = vpop.f32.mrf.mxu0
    %v1453 = vpop.f32.mrf.mxu0
    %v1454 = vadd.f32 0.0, %v1453
    %v1455 = vpop.f32.mrf.mxu0
    %1456 = vmatprep.mubr.bf16.mxu0 %v1051
    %1457 = vmatmul.mubr.bf16.gmra.mxu0 %v1050
    %v1458 = vpop.f32.mrf.mxu0
    %v1459 = vadd.f32 0.0, %v1458
    %v1460 = vpop.f32.mrf.mxu0
    %v1461 = vpop.f32.mrf.mxu0
    %v1462 = vadd.f32 0.0, %v1461
    %v1463 = vpop.f32.mrf.mxu0
    %1464 = vmatprep.mubr.bf16.mxu0 %v1053
    %1465 = vmatmul.mubr.bf16.gmra.mxu0 %v1052
    %v1466 = vpop.f32.mrf.mxu0
    %v1467 = vadd.f32 0.0, %v1466
    %v1468 = vpop.f32.mrf.mxu0
    %v1469 = vpop.f32.mrf.mxu0
    %v1470 = vadd.f32 0.0, %v1469
    %v1471 = vpop.f32.mrf.mxu0
    %1472 = vmatprep.mubr.bf16.mxu0 %v1055
    %1473 = vmatmul.mubr.bf16.gmra.mxu0 %v1054
    %v1474 = vpop.f32.mrf.mxu0
    %v1475 = vadd.f32 0.0, %v1474
    %v1476 = vpop.f32.mrf.mxu0
    %v1477 = vpop.f32.mrf.mxu0
    %v1478 = vadd.f32 0.0, %v1477
    %v1479 = vpop.f32.mrf.mxu0
    %1480 = vmatprep.mubr.bf16.mxu0 %v1057
    %1481 = vmatmul.mubr.bf16.gmra.mxu0 %v1056
    %v1482 = vpop.f32.mrf.mxu0
    %v1483 = vadd.f32 0.0, %v1482
    %v1484 = vpop.f32.mrf.mxu0
    %v1485 = vpop.f32.mrf.mxu0
    %v1486 = vadd.f32 0.0, %v1485
    %v1487 = vpop.f32.mrf.mxu0
    %1488 = vmatprep.mubr.bf16.mxu0 %v1059
    %1489 = vmatmul.mubr.bf16.gmra.mxu0 %v1058
    %v1490 = vpop.f32.mrf.mxu0
    %v1491 = vadd.f32 0.0, %v1490
    %v1492 = vpop.f32.mrf.mxu0
    %v1493 = vpop.f32.mrf.mxu0
    %v1494 = vadd.f32 0.0, %v1493
    %v1495 = vpop.f32.mrf.mxu0
    %1496 = vmatprep.mubr.bf16.mxu0 %v1061
    %1497 = vmatmul.mubr.bf16.gmra.mxu0 %v1060
    %v1498 = vpop.f32.mrf.mxu0
    %v1499 = vadd.f32 0.0, %v1498
    %v1500 = vpop.f32.mrf.mxu0
    %v1501 = vpop.f32.mrf.mxu0
    %v1502 = vadd.f32 0.0, %v1501
    %v1503 = vpop.f32.mrf.mxu0
    %1504 = vmatprep.mubr.bf16.mxu0 %v1063
    %1505 = vmatmul.mubr.bf16.gmra.mxu0 %v1062
    %v1506 = vpop.f32.mrf.mxu0
    %v1507 = vadd.f32 0.0, %v1506
    %v1508 = vpop.f32.mrf.mxu0
    %v1509 = vpop.f32.mrf.mxu0
    %v1510 = vadd.f32 0.0, %v1509
    %v1511 = vpop.f32.mrf.mxu0
    %1512 = vdwg.mxu0
    %v1513 = vpack.c.bf16 %v1262, %v1259
    %v1514 = vpack.c.bf16 %v1270, %v1267
    %v1515 = vpack.c.bf16 %v1278, %v1275
    %v1516 = vpack.c.bf16 %v1286, %v1283
    %v1517 = vpack.c.bf16 %v1294, %v1291
    %v1518 = vpack.c.bf16 %v1302, %v1299
    %v1519 = vpack.c.bf16 %v1310, %v1307
    %v1520 = vpack.c.bf16 %v1318, %v1315
    %v1521 = vpack.c.bf16 %v1326, %v1323
    %v1522 = vpack.c.bf16 %v1334, %v1331
    %v1523 = vpack.c.bf16 %v1342, %v1339
    %v1524 = vpack.c.bf16 %v1350, %v1347
    %v1525 = vpack.c.bf16 %v1358, %v1355
    %v1526 = vpack.c.bf16 %v1366, %v1363
    %v1527 = vpack.c.bf16 %v1374, %v1371
    %v1528 = vpack.c.bf16 %v1382, %v1379
    %v1529 = vpack.c.bf16 %v1390, %v1387
    %v1530 = vpack.c.bf16 %v1398, %v1395
    %v1531 = vpack.c.bf16 %v1406, %v1403
    %v1532 = vpack.c.bf16 %v1414, %v1411
    %v1533 = vpack.c.bf16 %v1422, %v1419
    %v1534 = vpack.c.bf16 %v1430, %v1427
    %v1535 = vpack.c.bf16 %v1438, %v1435
    %v1536 = vpack.c.bf16 %v1446, %v1443
    %v1537 = vpack.c.bf16 %v1454, %v1451
    %v1538 = vpack.c.bf16 %v1462, %v1459
    %v1539 = vpack.c.bf16 %v1470, %v1467
    %v1540 = vpack.c.bf16 %v1478, %v1475
    %v1541 = vpack.c.bf16 %v1486, %v1483
    %v1542 = vpack.c.bf16 %v1494, %v1491
    %v1543 = vpack.c.bf16 %v1502, %v1499
    %v1544 = vpack.c.bf16 %v1510, %v1507
    %v1577 = vunpack.c.l.b16 %v1513
    %v1578 = vunpack.c.h.b16 %v1513
    %v1579 = vunpack.c.l.b16 %v1514
    %v1580 = vunpack.c.h.b16 %v1514
    %v1581 = vunpack.c.l.b16 %v1515
    %v1582 = vunpack.c.h.b16 %v1515
    %v1583 = vunpack.c.l.b16 %v1516
    %v1584 = vunpack.c.h.b16 %v1516
    %v1585 = vunpack.c.l.b16 %v1517
    %v1586 = vunpack.c.h.b16 %v1517
    %v1587 = vunpack.c.l.b16 %v1518
    %v1588 = vunpack.c.h.b16 %v1518
    %v1589 = vunpack.c.l.b16 %v1519
    %v1590 = vunpack.c.h.b16 %v1519
    %v1591 = vunpack.c.l.b16 %v1520
    %v1592 = vunpack.c.h.b16 %v1520
    %v1593 = vunpack.c.l.b16 %v1521
    %v1594 = vunpack.c.h.b16 %v1521
    %v1595 = vunpack.c.l.b16 %v1522
    %v1596 = vunpack.c.h.b16 %v1522
    %v1597 = vunpack.c.l.b16 %v1523
    %v1598 = vunpack.c.h.b16 %v1523
    %v1599 = vunpack.c.l.b16 %v1524
    %v1600 = vunpack.c.h.b16 %v1524
    %v1601 = vunpack.c.l.b16 %v1525
    %v1602 = vunpack.c.h.b16 %v1525
    %v1603 = vunpack.c.l.b16 %v1526
    %v1604 = vunpack.c.h.b16 %v1526
    %v1605 = vunpack.c.l.b16 %v1527
    %v1606 = vunpack.c.h.b16 %v1527
    %v1607 = vunpack.c.l.b16 %v1528
    %v1608 = vunpack.c.h.b16 %v1528
    %v1609 = vunpack.c.l.b16 %v1529
    %v1610 = vunpack.c.h.b16 %v1529
    %v1611 = vunpack.c.l.b16 %v1530
    %v1612 = vunpack.c.h.b16 %v1530
    %v1613 = vunpack.c.l.b16 %v1531
    %v1614 = vunpack.c.h.b16 %v1531
    %v1615 = vunpack.c.l.b16 %v1532
    %v1616 = vunpack.c.h.b16 %v1532
    %v1617 = vunpack.c.l.b16 %v1533
    %v1618 = vunpack.c.h.b16 %v1533
    %v1619 = vunpack.c.l.b16 %v1534
    %v1620 = vunpack.c.h.b16 %v1534
    %v1621 = vunpack.c.l.b16 %v1535
    %v1622 = vunpack.c.h.b16 %v1535
    %v1623 = vunpack.c.l.b16 %v1536
    %v1624 = vunpack.c.h.b16 %v1536
    %v1625 = vunpack.c.l.b16 %v1537
    %v1626 = vunpack.c.h.b16 %v1537
    %v1627 = vunpack.c.l.b16 %v1538
    %v1628 = vunpack.c.h.b16 %v1538
    %v1629 = vunpack.c.l.b16 %v1539
    %v1630 = vunpack.c.h.b16 %v1539
    %v1631 = vunpack.c.l.b16 %v1540
    %v1632 = vunpack.c.h.b16 %v1540
    %v1633 = vunpack.c.l.b16 %v1541
    %v1634 = vunpack.c.h.b16 %v1541
    %v1635 = vunpack.c.l.b16 %v1542
    %v1636 = vunpack.c.h.b16 %v1542
    %v1637 = vunpack.c.l.b16 %v1543
    %v1638 = vunpack.c.h.b16 %v1543
    %v1639 = vunpack.c.l.b16 %v1544
    %v1640 = vunpack.c.h.b16 %v1544
    %v1641 = vpack.c.b16 %v1577, %v1577
    %v1642 = vpack.c.b16 %v1578, %v1578
    %v1643 = vpack.c.b16 %v1579, %v1579
    %v1644 = vpack.c.b16 %v1580, %v1580
    %v1645 = vpack.c.b16 %v1581, %v1581
    %v1646 = vpack.c.b16 %v1582, %v1582
    %v1647 = vpack.c.b16 %v1583, %v1583
    %v1648 = vpack.c.b16 %v1584, %v1584
    %v1649 = vpack.c.b16 %v1585, %v1585
    %v1650 = vpack.c.b16 %v1586, %v1586
    %v1651 = vpack.c.b16 %v1587, %v1587
    %v1652 = vpack.c.b16 %v1588, %v1588
    %v1653 = vpack.c.b16 %v1589, %v1589
    %v1654 = vpack.c.b16 %v1590, %v1590
    %v1655 = vpack.c.b16 %v1591, %v1591
    %v1656 = vpack.c.b16 %v1592, %v1592
    %v1657 = vpack.c.b16 %v1593, %v1593
    %v1658 = vpack.c.b16 %v1594, %v1594
    %v1659 = vpack.c.b16 %v1595, %v1595
    %v1660 = vpack.c.b16 %v1596, %v1596
    %v1661 = vpack.c.b16 %v1597, %v1597
    %v1662 = vpack.c.b16 %v1598, %v1598
    %v1663 = vpack.c.b16 %v1599, %v1599
    %v1664 = vpack.c.b16 %v1600, %v1600
    %v1665 = vpack.c.b16 %v1601, %v1601
    %v1666 = vpack.c.b16 %v1602, %v1602
    %v1667 = vpack.c.b16 %v1603, %v1603
    %v1668 = vpack.c.b16 %v1604, %v1604
    %v1669 = vpack.c.b16 %v1605, %v1605
    %v1670 = vpack.c.b16 %v1606, %v1606
    %v1671 = vpack.c.b16 %v1607, %v1607
    %v1672 = vpack.c.b16 %v1608, %v1608
    %v1673 = vpack.c.b16 %v1609, %v1609
    %v1674 = vpack.c.b16 %v1610, %v1610
    %v1675 = vpack.c.b16 %v1611, %v1611
    %v1676 = vpack.c.b16 %v1612, %v1612
    %v1677 = vpack.c.b16 %v1613, %v1613
    %v1678 = vpack.c.b16 %v1614, %v1614
    %v1679 = vpack.c.b16 %v1615, %v1615
    %v1680 = vpack.c.b16 %v1616, %v1616
    %v1681 = vpack.c.b16 %v1617, %v1617
    %v1682 = vpack.c.b16 %v1618, %v1618
    %v1683 = vpack.c.b16 %v1619, %v1619
    %v1684 = vpack.c.b16 %v1620, %v1620
    %v1685 = vpack.c.b16 %v1621, %v1621
    %v1686 = vpack.c.b16 %v1622, %v1622
    %v1687 = vpack.c.b16 %v1623, %v1623
    %v1688 = vpack.c.b16 %v1624, %v1624
    %v1689 = vpack.c.b16 %v1625, %v1625
    %v1690 = vpack.c.b16 %v1626, %v1626
    %v1691 = vpack.c.b16 %v1627, %v1627
    %v1692 = vpack.c.b16 %v1628, %v1628
    %v1693 = vpack.c.b16 %v1629, %v1629
    %v1694 = vpack.c.b16 %v1630, %v1630
    %v1695 = vpack.c.b16 %v1631, %v1631
    %v1696 = vpack.c.b16 %v1632, %v1632
    %v1697 = vpack.c.b16 %v1633, %v1633
    %v1698 = vpack.c.b16 %v1634, %v1634
    %v1699 = vpack.c.b16 %v1635, %v1635
    %v1700 = vpack.c.b16 %v1636, %v1636
    %v1701 = vpack.c.b16 %v1637, %v1637
    %v1702 = vpack.c.b16 %v1638, %v1638
    %v1703 = vpack.c.b16 %v1639, %v1639
    %v1704 = vpack.c.b16 %v1640, %v1640
    %1769 = vst [vmem:[#allocation9] sm:$0xf] %v1641
    %1770 = vst [vmem:[#allocation9 + $0x4] sm:$0xf] %v1642
    %1771 = vst [vmem:[#allocation9 + $0x8] sm:$0xf] %v1643
    %1772 = vst [vmem:[#allocation9 + $0xc] sm:$0xf] %v1644
    %1773 = vst [vmem:[#allocation9 + $0x10] sm:$0xf] %v1645
    %1774 = vst [vmem:[#allocation9 + $0x14] sm:$0xf] %v1646
    %1775 = vst [vmem:[#allocation9 + $0x18] sm:$0xf] %v1647
    %1776 = vst [vmem:[#allocation9 + $0x1c] sm:$0xf] %v1648
    %1777 = vst [vmem:[#allocation9 + $0x20] sm:$0xf] %v1649
    %1778 = vst [vmem:[#allocation9 + $0x24] sm:$0xf] %v1650
    %1779 = vst [vmem:[#allocation9 + $0x28] sm:$0xf] %v1651
    %1780 = vst [vmem:[#allocation9 + $0x2c] sm:$0xf] %v1652
    %1781 = vst [vmem:[#allocation9 + $0x30] sm:$0xf] %v1653
    %1782 = vst [vmem:[#allocation9 + $0x34] sm:$0xf] %v1654
    %1783 = vst [vmem:[#allocation9 + $0x38] sm:$0xf] %v1655
    %1784 = vst [vmem:[#allocation9 + $0x3c] sm:$0xf] %v1656
    %1785 = vst [vmem:[#allocation9 + $0x40] sm:$0xf] %v1657
    %1786 = vst [vmem:[#allocation9 + $0x44] sm:$0xf] %v1658
    %1787 = vst [vmem:[#allocation9 + $0x48] sm:$0xf] %v1659
    %1788 = vst [vmem:[#allocation9 + $0x4c] sm:$0xf] %v1660
    %1789 = vst [vmem:[#allocation9 + $0x50] sm:$0xf] %v1661
    %1790 = vst [vmem:[#allocation9 + $0x54] sm:$0xf] %v1662
    %1791 = vst [vmem:[#allocation9 + $0x58] sm:$0xf] %v1663
    %1792 = vst [vmem:[#allocation9 + $0x5c] sm:$0xf] %v1664
    %1793 = vst [vmem:[#allocation9 + $0x60] sm:$0xf] %v1665
    %1794 = vst [vmem:[#allocation9 + $0x64] sm:$0xf] %v1666
    %1795 = vst [vmem:[#allocation9 + $0x68] sm:$0xf] %v1667
    %1796 = vst [vmem:[#allocation9 + $0x6c] sm:$0xf] %v1668
    %1797 = vst [vmem:[#allocation9 + $0x70] sm:$0xf] %v1669
    %1798 = vst [vmem:[#allocation9 + $0x74] sm:$0xf] %v1670
    %1799 = vst [vmem:[#allocation9 + $0x78] sm:$0xf] %v1671
    %1800 = vst [vmem:[#allocation9 + $0x7c] sm:$0xf] %v1672
    %1801 = vst [vmem:[#allocation9 + $0x80] sm:$0xf] %v1673
    %1802 = vst [vmem:[#allocation9 + $0x84] sm:$0xf] %v1674
    %1803 = vst [vmem:[#allocation9 + $0x88] sm:$0xf] %v1675
    %1804 = vst [vmem:[#allocation9 + $0x8c] sm:$0xf] %v1676
    %1805 = vst [vmem:[#allocation9 + $0x90] sm:$0xf] %v1677
    %1806 = vst [vmem:[#allocation9 + $0x94] sm:$0xf] %v1678
    %1807 = vst [vmem:[#allocation9 + $0x98] sm:$0xf] %v1679
    %1808 = vst [vmem:[#allocation9 + $0x9c] sm:$0xf] %v1680
    %1809 = vst [vmem:[#allocation9 + $0xa0] sm:$0xf] %v1681
    %1810 = vst [vmem:[#allocation9 + $0xa4] sm:$0xf] %v1682
    %1811 = vst [vmem:[#allocation9 + $0xa8] sm:$0xf] %v1683
    %1812 = vst [vmem:[#allocation9 + $0xac] sm:$0xf] %v1684
    %1813 = vst [vmem:[#allocation9 + $0xb0] sm:$0xf] %v1685
    %1814 = vst [vmem:[#allocation9 + $0xb4] sm:$0xf] %v1686
    %1815 = vst [vmem:[#allocation9 + $0xb8] sm:$0xf] %v1687
    %1816 = vst [vmem:[#allocation9 + $0xbc] sm:$0xf] %v1688
    %1817 = vst [vmem:[#allocation9 + $0xc0] sm:$0xf] %v1689
    %1818 = vst [vmem:[#allocation9 + $0xc4] sm:$0xf] %v1690
    %1819 = vst [vmem:[#allocation9 + $0xc8] sm:$0xf] %v1691
    %1820 = vst [vmem:[#allocation9 + $0xcc] sm:$0xf] %v1692
    %1821 = vst [vmem:[#allocation9 + $0xd0] sm:$0xf] %v1693
    %1822 = vst [vmem:[#allocation9 + $0xd4] sm:$0xf] %v1694
    %1823 = vst [vmem:[#allocation9 + $0xd8] sm:$0xf] %v1695
    %1824 = vst [vmem:[#allocation9 + $0xdc] sm:$0xf] %v1696
    %1825 = vst [vmem:[#allocation9 + $0xe0] sm:$0xf] %v1697
    %1826 = vst [vmem:[#allocation9 + $0xe4] sm:$0xf] %v1698
    %1827 = vst [vmem:[#allocation9 + $0xe8] sm:$0xf] %v1699
    %1828 = vst [vmem:[#allocation9 + $0xec] sm:$0xf] %v1700
    %1829 = vst [vmem:[#allocation9 + $0xf0] sm:$0xf] %v1701
    %1830 = vst [vmem:[#allocation9 + $0xf4] sm:$0xf] %v1702
    %1831 = vst [vmem:[#allocation9 + $0xf8] sm:$0xf] %v1703
    %1832 = vst [vmem:[#allocation9 + $0xfc] sm:$0xf] %v1704
    // Predicated region
    $region34: #{tpu_custom_call.1} parent=1 // pred_check
      _
    $region35: #{tpu_custom_call.1} parent=1 // pred_check_branch
      %1834 = sbr.rel (0) target = $region37
    $region36: #{tpu_custom_call.1} parent=1 // pred_region
      %s1836 = ssub.s32 4096, 4096
      %1837 = vsyncadd [#allocation5], %s1836
      %s1838 = sshll.u32 [#allocation9], 4
      %s1839 = int_to_ptr.vmem [resolvable:$true] %s1838
      %1844 = dma.vmem_to_hbm [thread:$0]  %s1839, 4096, %s4, [#allocation5], 64, 64, 4
    $region37: #{tpu_custom_call.1} parent=1 // pred_fallthru
      _
    // Predicated region
    $region38: #{tpu_custom_call.1} parent=1 // pred_check
      _
    $region39: #{tpu_custom_call.1} parent=1 // pred_check_branch
      %1846 = sbr.rel (0) target = $region41
    $region40: #{tpu_custom_call.1} parent=1 // pred_region
      %1847 = dma.done [#allocation5], 4096
    $region41: #{tpu_custom_call.1} parent=1 // pred_fallthru
      _
    %1848 = vsyncpa [#allocation4], 1
    %1849 = vsyncpa [#allocation7], 1
    %1850 = vsyncpa [#allocation5], 1

</llo_original>
